<compile_context>
chip_gen: v5e
topology: v5e:2x2
jax: 0.10.0
libtpu: 0.0.40
codegen_flags: <defaults>
</compile_context>

<pallas_src>
import functools

import jax
import jax.numpy as jnp
from jax.experimental import pallas as pl
from jax.experimental.pallas import tpu as pltpu

INPUT_SHAPE = (1, 28, 28)        # (C, H, W), PyTorch NCHW
DEFAULT_CNN = (16, 16)           # conv channel spec
NUM_CLASSES = 10
KERNEL, STRIDE, PADDING = 3, 2, 1
LANE = 128                       # TPU lane width


# ---------------------------------------------------------------------------
# Pallas kernel: one MXU GEMM + bias (+ optional ReLU), whole-array block.
# ---------------------------------------------------------------------------
def _gemm_bias_kernel(x_ref, w_ref, b_ref, o_ref, *, apply_relu):
    # x_ref: (M, K) bf16   w_ref: (K, N) bf16   b_ref: (1, N) f32   o_ref: (M, N) f32
    acc = jnp.dot(x_ref[...], w_ref[...], preferred_element_type=jnp.float32)
    acc = acc + b_ref[...]
    if apply_relu:
        acc = jnp.maximum(acc, 0.0)
    o_ref[...] = acc


def _linear_pallas(x, w, b, *, apply_relu):
    """y = (relu?)(x @ w + b).  Single block, no grid (shapes are tiny)."""
    m = x.shape[0]
    n = w.shape[1]
    return pl.pallas_call(
        functools.partial(_gemm_bias_kernel, apply_relu=apply_relu),
        out_shape=jax.ShapeDtypeStruct((m, n), jnp.float32),
        in_specs=[
            pl.BlockSpec(memory_space=pltpu.MemorySpace.VMEM),
            pl.BlockSpec(memory_space=pltpu.MemorySpace.VMEM),
            pl.BlockSpec(memory_space=pltpu.MemorySpace.VMEM),
        ],
        out_specs=pl.BlockSpec(memory_space=pltpu.MemorySpace.VMEM),
    )(x, w, b)


# ---------------------------------------------------------------------------
# Layout glue (no arithmetic): im2col patch extraction, NHWC <-> NCHW.
# ---------------------------------------------------------------------------
def _im2col(x_nhwc, kernel, stride, padding):
    """(B,H,W,C) -> (B*OH*OW, kernel*kernel*C) patches, row order (kh, kw, c)."""
    b, h, w, c = x_nhwc.shape
    oh = (h + 2 * padding - kernel) // stride + 1
    ow = (w + 2 * padding - kernel) // stride + 1
    xp = jnp.pad(x_nhwc, ((0, 0), (padding, padding), (padding, padding), (0, 0)))
    taps = []
    for kh in range(kernel):
        for kw in range(kernel):
            taps.append(
                xp[:, kh:kh + stride * (oh - 1) + 1:stride,
                      kw:kw + stride * (ow - 1) + 1:stride, :])
    patches = jnp.stack(taps, axis=3)                 # (B, OH, OW, K*K, C)
    return patches.reshape(b * oh * ow, kernel * kernel * c), (oh, ow)


def _pad_lanes(mat, lanes=LANE):
    pad = (-mat.shape[-1]) % lanes
    if pad:
        mat = jnp.pad(mat, ((0, 0), (0, pad)))
    return mat


# ---------------------------------------------------------------------------
# Parameters: PyTorch layout at init; packed ONCE into kernel layout.
# ---------------------------------------------------------------------------
def init_params(key):
    """PyTorch-style layouts: conv (Cout,Cin,KH,KW), fc (O,D); U(-1/sqrt(fan_in), .)."""
    keys = jax.random.split(key, 2 * (len(DEFAULT_CNN) + 1))
    convs, cin, ki = [], INPUT_SHAPE[0], 0
    for cout in DEFAULT_CNN:
        bound = 1.0 / jnp.sqrt(jnp.float32(cin * KERNEL * KERNEL))
        w = jax.random.uniform(keys[ki], (cout, cin, KERNEL, KERNEL),
                               jnp.float32, -bound, bound)
        b = jax.random.uniform(keys[ki + 1], (cout,), jnp.float32, -bound, bound)
        convs.append((w, b))
        cin = cout
        ki += 2
    out_size = INPUT_SHAPE[1]
    for _ in DEFAULT_CNN:
        out_size = (out_size + 2 * PADDING - KERNEL) // STRIDE + 1
    fc_in = out_size * out_size * DEFAULT_CNN[-1]     # 7*7*16 = 784
    bound = 1.0 / jnp.sqrt(jnp.float32(fc_in))
    fw = jax.random.uniform(keys[ki], (NUM_CLASSES, fc_in), jnp.float32, -bound, bound)
    fb = jax.random.uniform(keys[ki + 1], (NUM_CLASSES,), jnp.float32, -bound, bound)
    return {"convs": convs, "fc": (fw, fb)}


def pack_params(params):
    """One-time conversion to kernel layout: GEMM matrices, 128-lane padded, bf16."""
    packed_convs = []
    for w, b in params["convs"]:
        cout = w.shape[0]
        wmat = jnp.transpose(w, (2, 3, 1, 0)).reshape(-1, cout)   # (KH*KW*Cin, Cout)
        packed_convs.append((
            _pad_lanes(wmat).astype(jnp.bfloat16),
            _pad_lanes(b.reshape(1, -1)).astype(jnp.float32),
        ))
    fw, fb = params["fc"]
    packed_fc = (
        _pad_lanes(fw.T).astype(jnp.bfloat16),                    # (D, O) pre-transposed
        _pad_lanes(fb.reshape(1, -1)).astype(jnp.float32),
    )
    return {"convs": packed_convs, "fc": packed_fc}


# ---------------------------------------------------------------------------
# Forward pass (CNN.forward semantics).
# ---------------------------------------------------------------------------
def model_forward(packed, x_nchw):
    b = x_nchw.shape[0]
    x = jnp.transpose(x_nchw, (0, 2, 3, 1))           # NHWC: channels on lanes
    for (wmat, bias), cout in zip(packed["convs"], DEFAULT_CNN):
        patches, (oh, ow) = _im2col(x, KERNEL, STRIDE, PADDING)
        y = _linear_pallas(patches.astype(jnp.bfloat16), wmat, bias, apply_relu=True)
        x = y[:, :cout].reshape(b, oh, ow, cout)
    # PyTorch nn.Flatten on NCHW => (C, H, W) element order.
    flat = jnp.transpose(x, (0, 3, 1, 2)).reshape(b, -1)
    fw, fb = packed["fc"]
    logits = _linear_pallas(flat.astype(jnp.bfloat16), fw, fb, apply_relu=False)
    return logits[:, :NUM_CLASSES]


# ---------------------------------------------------------------------------
# Plain-JAX f32 reference (independent of the im2col/packing path).
# ---------------------------------------------------------------------------
def reference_forward(params, x_nchw):
    y = x_nchw
    for w, b in params["convs"]:
        y = jax.lax.conv_general_dilated(
            y, w, window_strides=(STRIDE, STRIDE),
            padding=((PADDING, PADDING), (PADDING, PADDING)),
            dimension_numbers=("NCHW", "OIHW", "NCHW"))
        y = jnp.maximum(y + b[None, :, None, None], 0.0)
    y = y.reshape(y.shape[0], -1)
    fw, fb = params["fc"]
    return y @ fw.T + fb


if __name__ == "__main__":
    key = jax.random.PRNGKey(0)
    kx, kp = jax.random.split(key)

    B = 4
    x = jax.random.normal(kx, (B, *INPUT_SHAPE), dtype=jnp.float32)

    params = init_params(kp)
    packed = pack_params(params)          # one-time layout conversion (not per call)

    fwd = jax.jit(model_forward)
    out = jax.block_until_ready(fwd(packed, x))

    ref = reference_forward(params, x)
    assert out.shape == (B, NUM_CLASSES)
    # bf16 matmul inputs with f32 accumulation -> loosened tolerance vs f32 reference.
    assert jnp.allclose(out, ref, atol=2e-2, rtol=2e-2), float(jnp.max(jnp.abs(out - ref)))

    print("KERNEL_OK")
</pallas_src>

<mosaic_0001>
module attributes {stable_mosaic.version = 11 : i64} {
  func.func @_gemm_bias_kernel(%arg0: memref<784x9xbf16, #tpu.memory_space<vmem>>, %arg1: memref<9x128xbf16, #tpu.memory_space<vmem>>, %arg2: memref<1x128xf32, #tpu.memory_space<vmem>>, %arg3: memref<784x128xf32, #tpu.memory_space<vmem>>) attributes {dimension_semantics = [], scalar_prefetch = 0 : i64, scratch_operands = 0 : i64, tpu.core_type = #tpu.core_type<tc>} {
    %c0 = arith.constant 0 : index
    %c0_0 = arith.constant 0 : index
    %0 = vector.load %arg0[%c0, %c0_0] : memref<784x9xbf16, #tpu.memory_space<vmem>>, vector<784x9xbf16>
    %c0_1 = arith.constant 0 : index
    %c0_2 = arith.constant 0 : index
    %1 = vector.load %arg1[%c0_1, %c0_2] : memref<9x128xbf16, #tpu.memory_space<vmem>>, vector<9x128xbf16>
    %cst = arith.constant dense<0.000000e+00> : vector<784x128xf32>
    %2 = tpu.matmul %0, %1, %cst {dimension_numbers = #tpu.dot_dimension_numbers<[1], [0], [0], [1], [0, 0, 1, 1], [], []>} : vector<784x9xbf16>, vector<9x128xbf16>, vector<784x128xf32> -> vector<784x128xf32>
    %c0_3 = arith.constant 0 : index
    %c0_4 = arith.constant 0 : index
    %3 = vector.load %arg2[%c0_3, %c0_4] : memref<1x128xf32, #tpu.memory_space<vmem>>, vector<1x128xf32>
    %4 = vector.broadcast %3 : vector<1x128xf32> to vector<784x128xf32>
    %5 = arith.addf %2, %4 : vector<784x128xf32>
    %cst_5 = arith.constant 0.000000e+00 : f32
    %6 = vector.broadcast %cst_5 : f32 to vector<784x128xf32>
    %7 = arith.maximumf %5, %6 : vector<784x128xf32>
    %c0_6 = arith.constant 0 : index
    %c0_7 = arith.constant 0 : index
    %8 = vector.load %arg3[%c0_6, %c0_7] : memref<784x128xf32, #tpu.memory_space<vmem>>, vector<784x128xf32>
    tpu.vector_store %arg3[%c0_6, %c0_7], %7 {strides = array<i32>} : memref<784x128xf32, #tpu.memory_space<vmem>>, vector<784x128xf32>,
    return
  }
}

module attributes {stable_mosaic.version = 11 : i64} {
  func.func @_gemm_bias_kernel(%arg0: memref<196x144xbf16, #tpu.memory_space<vmem>>, %arg1: memref<144x128xbf16, #tpu.memory_space<vmem>>, %arg2: memref<1x128xf32, #tpu.memory_space<vmem>>, %arg3: memref<196x128xf32, #tpu.memory_space<vmem>>) attributes {dimension_semantics = [], scalar_prefetch = 0 : i64, scratch_operands = 0 : i64, tpu.core_type = #tpu.core_type<tc>} {
    %c0 = arith.constant 0 : index
    %c0_0 = arith.constant 0 : index
    %0 = vector.load %arg0[%c0, %c0_0] : memref<196x144xbf16, #tpu.memory_space<vmem>>, vector<196x144xbf16>
    %c0_1 = arith.constant 0 : index
    %c0_2 = arith.constant 0 : index
    %1 = vector.load %arg1[%c0_1, %c0_2] : memref<144x128xbf16, #tpu.memory_space<vmem>>, vector<144x128xbf16>
    %cst = arith.constant dense<0.000000e+00> : vector<196x128xf32>
    %2 = tpu.matmul %0, %1, %cst {dimension_numbers = #tpu.dot_dimension_numbers<[1], [0], [0], [1], [0, 0, 1, 1], [], []>} : vector<196x144xbf16>, vector<144x128xbf16>, vector<196x128xf32> -> vector<196x128xf32>
    %c0_3 = arith.constant 0 : index
    %c0_4 = arith.constant 0 : index
    %3 = vector.load %arg2[%c0_3, %c0_4] : memref<1x128xf32, #tpu.memory_space<vmem>>, vector<1x128xf32>
    %4 = vector.broadcast %3 : vector<1x128xf32> to vector<196x128xf32>
    %5 = arith.addf %2, %4 : vector<196x128xf32>
    %cst_5 = arith.constant 0.000000e+00 : f32
    %6 = vector.broadcast %cst_5 : f32 to vector<196x128xf32>
    %7 = arith.maximumf %5, %6 : vector<196x128xf32>
    %c0_6 = arith.constant 0 : index
    %c0_7 = arith.constant 0 : index
    %8 = vector.load %arg3[%c0_6, %c0_7] : memref<196x128xf32, #tpu.memory_space<vmem>>, vector<196x128xf32>
    tpu.vector_store %arg3[%c0_6, %c0_7], %7 {strides = array<i32>} : memref<196x128xf32, #tpu.memory_space<vmem>>, vector<196x128xf32>,
    return
  }
}

module attributes {stable_mosaic.version = 11 : i64} {
  func.func @_gemm_bias_kernel(%arg0: memref<4x784xbf16, #tpu.memory_space<vmem>>, %arg1: memref<784x128xbf16, #tpu.memory_space<vmem>>, %arg2: memref<1x128xf32, #tpu.memory_space<vmem>>, %arg3: memref<4x128xf32, #tpu.memory_space<vmem>>) attributes {dimension_semantics = [], scalar_prefetch = 0 : i64, scratch_operands = 0 : i64, tpu.core_type = #tpu.core_type<tc>} {
    %c0 = arith.constant 0 : index
    %c0_0 = arith.constant 0 : index
    %0 = vector.load %arg0[%c0, %c0_0] : memref<4x784xbf16, #tpu.memory_space<vmem>>, vector<4x784xbf16>
    %c0_1 = arith.constant 0 : index
    %c0_2 = arith.constant 0 : index
    %1 = vector.load %arg1[%c0_1, %c0_2] : memref<784x128xbf16, #tpu.memory_space<vmem>>, vector<784x128xbf16>
    %cst = arith.constant dense<0.000000e+00> : vector<4x128xf32>
    %2 = tpu.matmul %0, %1, %cst {dimension_numbers = #tpu.dot_dimension_numbers<[1], [0], [0], [1], [0, 0, 1, 1], [], []>} : vector<4x784xbf16>, vector<784x128xbf16>, vector<4x128xf32> -> vector<4x128xf32>
    %c0_3 = arith.constant 0 : index
    %c0_4 = arith.constant 0 : index
    %3 = vector.load %arg2[%c0_3, %c0_4] : memref<1x128xf32, #tpu.memory_space<vmem>>, vector<1x128xf32>
    %4 = vector.broadcast %3 : vector<1x128xf32> to vector<4x128xf32>
    %5 = arith.addf %2, %4 : vector<4x128xf32>
    %c0_5 = arith.constant 0 : index
    %c0_6 = arith.constant 0 : index
    %6 = vector.load %arg3[%c0_5, %c0_6] : memref<4x128xf32, #tpu.memory_space<vmem>>, vector<4x128xf32>
    tpu.vector_store %arg3[%c0_5, %c0_6], %5 {strides = array<i32>} : memref<4x128xf32, #tpu.memory_space<vmem>>, vector<4x128xf32>,
    return
  }
}

</mosaic_0001>

<llo_original>
// kernel: model_forward.3
$region0: #{model_forward.3}
  #allocation0 [shape = 'u32[]', space=smem, size = 0x4, offset = 0x4, fixed_abs, tag = 'smem constant byte address 0x4 - core index']
  #allocation1 [shape = 'u32[72,128]{1,0:T(1,128)}', space=vmem, size = 0x9000, scoped, tag = 'internal scratch']
  %s0 = inlined_call_operand.vmem [shape: bf16[784,9], index: 0, kind: input, shape index: {}]
  %s1 = inlined_call_operand.vmem [shape: bf16[9,128], index: 1, kind: input, shape index: {}]
  %s2 = inlined_call_operand.vmem [shape: f32[1,128], index: 2, kind: input, shape index: {}]
  %s3 = inlined_call_operand.vmem [shape: f32[784,128], index: 3, kind: output, shape index: {}]
  %s4 = sld [smem:[#allocation0]]
  $region22: #{model_forward.3} parent=0
    _
  %s6 = ssub.s32 1, %s4
  %s7 = scalar_select 0, %s6, %s4
  // Predicated region
  $region2: #{model_forward.3} parent=0 // pred_check
    _
  $region3: #{model_forward.3} parent=0 // pred_check_branch
    %9 = sbr.rel (0) target = $region5
  $region4: #{model_forward.3} parent=0 // pred_region
    _
  $region5: #{model_forward.3} parent=0 // pred_fallthru
    _
  // Predicated region
  $region6: #{model_forward.3} parent=0 // pred_check
    _
  $region7: #{model_forward.3} parent=0 // pred_check_branch
    %11 = sbr.rel (0) target = $region9
  $region8: #{model_forward.3} parent=0 // pred_region
    _
  $region9: #{model_forward.3} parent=0 // pred_fallthru
    _
  // Predicated region
  $region10: #{model_forward.3} parent=0 // pred_check
    _
  $region11: #{model_forward.3} parent=0 // pred_check_branch
    %13 = sbr.rel (0) target = $region13
  $region12: #{model_forward.3} parent=0 // pred_region
    _
  $region13: #{model_forward.3} parent=0 // pred_fallthru
    _
  %v15 = vld [vmem:[%s0] sm:$0xf]
  %v16 = vld [vmem:[%s0 + $0x4] sm:$0xf]
  %v17 = vld [vmem:[%s0 + $0x8] sm:$0xf]
  %v18 = vld [vmem:[%s0 + $0xc] sm:$0xf]
  %v19 = vld [vmem:[%s0 + $0x10] sm:$0xf]
  %v20 = vld [vmem:[%s0 + $0x14] sm:$0xf]
  %v21 = vld [vmem:[%s0 + $0x18] sm:$0xf]
  %v22 = vld [vmem:[%s0 + $0x1c] sm:$0xf]
  %v23 = vld [vmem:[%s0 + $0x20] sm:$0xf]
  %v24 = vld [vmem:[%s0 + $0x24] sm:$0xf]
  %v25 = vld [vmem:[%s0 + $0x28] sm:$0xf]
  %v26 = vld [vmem:[%s0 + $0x2c] sm:$0xf]
  %v27 = vld [vmem:[%s0 + $0x30] sm:$0xf]
  %v28 = vld [vmem:[%s0 + $0x34] sm:$0xf]
  %v29 = vld [vmem:[%s0 + $0x38] sm:$0xf]
  %v30 = vld [vmem:[%s0 + $0x3c] sm:$0xf]
  %v31 = vld [vmem:[%s0 + $0x40] sm:$0xf]
  %v32 = vld [vmem:[%s0 + $0x44] sm:$0xf]
  %v33 = vld [vmem:[%s0 + $0x48] sm:$0xf]
  %v34 = vld [vmem:[%s0 + $0x4c] sm:$0xf]
  %v35 = vld [vmem:[%s0 + $0x50] sm:$0xf]
  %v36 = vld [vmem:[%s0 + $0x54] sm:$0xf]
  %v37 = vld [vmem:[%s0 + $0x58] sm:$0xf]
  %v38 = vld [vmem:[%s0 + $0x5c] sm:$0xf]
  %v39 = vld [vmem:[%s0 + $0x60] sm:$0xf]
  %v40 = vld [vmem:[%s0 + $0x64] sm:$0xf]
  %v41 = vld [vmem:[%s0 + $0x68] sm:$0xf]
  %v42 = vld [vmem:[%s0 + $0x6c] sm:$0xf]
  %v43 = vld [vmem:[%s0 + $0x70] sm:$0xf]
  %v44 = vld [vmem:[%s0 + $0x74] sm:$0xf]
  %v45 = vld [vmem:[%s0 + $0x78] sm:$0xf]
  %v46 = vld [vmem:[%s0 + $0x7c] sm:$0xf]
  %v47 = vld [vmem:[%s0 + $0x80] sm:$0xf]
  %v48 = vld [vmem:[%s0 + $0x84] sm:$0xf]
  %v49 = vld [vmem:[%s0 + $0x88] sm:$0xf]
  %v50 = vld [vmem:[%s0 + $0x8c] sm:$0xf]
  %v51 = vld [vmem:[%s0 + $0x90] sm:$0xf]
  %v52 = vld [vmem:[%s0 + $0x94] sm:$0xf]
  %v53 = vld [vmem:[%s0 + $0x98] sm:$0xf]
  %v54 = vld [vmem:[%s0 + $0x9c] sm:$0xf]
  %v55 = vld [vmem:[%s0 + $0xa0] sm:$0xf]
  %v56 = vld [vmem:[%s0 + $0xa4] sm:$0xf]
  %v57 = vld [vmem:[%s0 + $0xa8] sm:$0xf]
  %v58 = vld [vmem:[%s0 + $0xac] sm:$0xf]
  %v59 = vld [vmem:[%s0 + $0xb0] sm:$0xf]
  %v60 = vld [vmem:[%s0 + $0xb4] sm:$0xf]
  %v61 = vld [vmem:[%s0 + $0xb8] sm:$0xf]
  %v62 = vld [vmem:[%s0 + $0xbc] sm:$0xf]
  %v63 = vld [vmem:[%s0 + $0xc0] sm:$0xf]
  %v64 = vld [vmem:[%s0 + $0xc4] sm:$0xf]
  %v65 = vld [vmem:[%s0 + $0xc8] sm:$0xf]
  %v66 = vld [vmem:[%s0 + $0xcc] sm:$0xf]
  %v67 = vld [vmem:[%s0 + $0xd0] sm:$0xf]
  %v68 = vld [vmem:[%s0 + $0xd4] sm:$0xf]
  %v69 = vld [vmem:[%s0 + $0xd8] sm:$0xf]
  %v70 = vld [vmem:[%s0 + $0xdc] sm:$0xf]
  %v71 = vld [vmem:[%s0 + $0xe0] sm:$0xf]
  %v72 = vld [vmem:[%s0 + $0xe4] sm:$0xf]
  %v73 = vld [vmem:[%s0 + $0xe8] sm:$0xf]
  %v74 = vld [vmem:[%s0 + $0xec] sm:$0xf]
  %v75 = vld [vmem:[%s0 + $0xf0] sm:$0xf]
  %v76 = vld [vmem:[%s0 + $0xf4] sm:$0xf]
  %v77 = vld [vmem:[%s0 + $0xf8] sm:$0xf]
  %v78 = vld [vmem:[%s0 + $0xfc] sm:$0xf]
  %v79 = vld [vmem:[%s0 + $0x100] sm:$0xf]
  %v80 = vld [vmem:[%s0 + $0x104] sm:$0xf]
  %v81 = vld [vmem:[%s0 + $0x108] sm:$0xf]
  %v82 = vld [vmem:[%s0 + $0x10c] sm:$0xf]
  %v83 = vld [vmem:[%s0 + $0x110] sm:$0xf]
  %v84 = vld [vmem:[%s0 + $0x114] sm:$0xf]
  %v85 = vld [vmem:[%s0 + $0x118] sm:$0xf]
  %v86 = vld [vmem:[%s0 + $0x11c] sm:$0xf]
  %v87 = vld [vmem:[%s0 + $0x120] sm:$0xf]
  %v88 = vld [vmem:[%s0 + $0x124] sm:$0xf]
  %v89 = vld [vmem:[%s0 + $0x128] sm:$0xf]
  %v90 = vld [vmem:[%s0 + $0x12c] sm:$0xf]
  %v91 = vld [vmem:[%s0 + $0x130] sm:$0xf]
  %v92 = vld [vmem:[%s0 + $0x134] sm:$0xf]
  %v93 = vld [vmem:[%s0 + $0x138] sm:$0xf]
  %v94 = vld [vmem:[%s0 + $0x13c] sm:$0xf]
  %v95 = vld [vmem:[%s0 + $0x140] sm:$0xf]
  %v96 = vld [vmem:[%s0 + $0x144] sm:$0xf]
  %v97 = vld [vmem:[%s0 + $0x148] sm:$0xf]
  %v98 = vld [vmem:[%s0 + $0x14c] sm:$0xf]
  %v99 = vld [vmem:[%s0 + $0x150] sm:$0xf]
  %v100 = vld [vmem:[%s0 + $0x154] sm:$0xf]
  %v101 = vld [vmem:[%s0 + $0x158] sm:$0xf]
  %v102 = vld [vmem:[%s0 + $0x15c] sm:$0xf]
  %v103 = vld [vmem:[%s0 + $0x160] sm:$0xf]
  %v104 = vld [vmem:[%s0 + $0x164] sm:$0xf]
  %v105 = vld [vmem:[%s0 + $0x168] sm:$0xf]
  %v106 = vld [vmem:[%s0 + $0x16c] sm:$0xf]
  %v107 = vld [vmem:[%s0 + $0x170] sm:$0xf]
  %v108 = vld [vmem:[%s0 + $0x174] sm:$0xf]
  %v109 = vld [vmem:[%s0 + $0x178] sm:$0xf]
  %v110 = vld [vmem:[%s0 + $0x17c] sm:$0xf]
  %v111 = vld [vmem:[%s0 + $0x180] sm:$0xf]
  %v112 = vld [vmem:[%s0 + $0x184] sm:$0xf]
  %v113 = vld [vmem:[%s1] sm:$0xf]
  %v114 = vld [vmem:[%s1 + $0x4] sm:$0x1]
  %v115 = vld [vmem:[%s2] sm:$0x1]
  %v117 = vperm.slane %v115, 0
  %v217 = vunpack.c.l.b16 %v15
  %v218 = vunpack.c.l.b16 %v16
  %v219 = vunpack.c.l.b16 %v17
  %v220 = vunpack.c.l.b16 %v18
  %v221 = vunpack.c.l.b16 %v19
  %v222 = vunpack.c.l.b16 %v20
  %v223 = vunpack.c.l.b16 %v21
  %v224 = vunpack.c.l.b16 %v22
  %v225 = vunpack.c.l.b16 %v23
  %v226 = vunpack.c.l.b16 %v24
  %v227 = vunpack.c.l.b16 %v25
  %v228 = vunpack.c.l.b16 %v26
  %v229 = vunpack.c.l.b16 %v27
  %v230 = vunpack.c.l.b16 %v28
  %v231 = vunpack.c.l.b16 %v29
  %v232 = vunpack.c.l.b16 %v30
  %v233 = vunpack.c.l.b16 %v31
  %v234 = vunpack.c.l.b16 %v32
  %v235 = vunpack.c.l.b16 %v33
  %v236 = vunpack.c.l.b16 %v34
  %v237 = vunpack.c.l.b16 %v35
  %v238 = vunpack.c.l.b16 %v36
  %v239 = vunpack.c.l.b16 %v37
  %v240 = vunpack.c.l.b16 %v38
  %v241 = vunpack.c.l.b16 %v39
  %v242 = vunpack.c.l.b16 %v40
  %v243 = vunpack.c.l.b16 %v41
  %v244 = vunpack.c.l.b16 %v42
  %v245 = vunpack.c.l.b16 %v43
  %v246 = vunpack.c.l.b16 %v44
  %v247 = vunpack.c.l.b16 %v45
  %v248 = vunpack.c.l.b16 %v46
  %v249 = vunpack.c.l.b16 %v47
  %v250 = vunpack.c.l.b16 %v48
  %v251 = vunpack.c.l.b16 %v49
  %v252 = vunpack.c.l.b16 %v50
  %v253 = vunpack.c.l.b16 %v51
  %v254 = vunpack.c.l.b16 %v52
  %v255 = vunpack.c.l.b16 %v53
  %v256 = vunpack.c.l.b16 %v54
  %v257 = vunpack.c.l.b16 %v55
  %v258 = vunpack.c.l.b16 %v56
  %v259 = vunpack.c.l.b16 %v57
  %v260 = vunpack.c.l.b16 %v58
  %v261 = vunpack.c.l.b16 %v59
  %v262 = vunpack.c.l.b16 %v60
  %v263 = vunpack.c.l.b16 %v61
  %v264 = vunpack.c.l.b16 %v62
  %v265 = vunpack.c.l.b16 %v63
  %v266 = vunpack.c.l.b16 %v64
  %v267 = vunpack.c.l.b16 %v65
  %v268 = vunpack.c.l.b16 %v66
  %v269 = vunpack.c.l.b16 %v67
  %v270 = vunpack.c.l.b16 %v68
  %v271 = vunpack.c.l.b16 %v69
  %v272 = vunpack.c.l.b16 %v70
  %v273 = vunpack.c.l.b16 %v71
  %v274 = vunpack.c.l.b16 %v72
  %v275 = vunpack.c.l.b16 %v73
  %v276 = vunpack.c.l.b16 %v74
  %v277 = vunpack.c.l.b16 %v75
  %v278 = vunpack.c.l.b16 %v76
  %v279 = vunpack.c.l.b16 %v77
  %v280 = vunpack.c.l.b16 %v78
  %v281 = vunpack.c.l.b16 %v79
  %v282 = vunpack.c.l.b16 %v80
  %v283 = vunpack.c.l.b16 %v81
  %v284 = vunpack.c.l.b16 %v82
  %v285 = vunpack.c.l.b16 %v83
  %v286 = vunpack.c.l.b16 %v84
  %v287 = vunpack.c.l.b16 %v85
  %v288 = vunpack.c.l.b16 %v86
  %v289 = vunpack.c.l.b16 %v87
  %v290 = vunpack.c.l.b16 %v88
  %v291 = vunpack.c.l.b16 %v89
  %v292 = vunpack.c.l.b16 %v90
  %v293 = vunpack.c.l.b16 %v91
  %v294 = vunpack.c.l.b16 %v92
  %v295 = vunpack.c.l.b16 %v93
  %v296 = vunpack.c.l.b16 %v94
  %v297 = vunpack.c.l.b16 %v95
  %v298 = vunpack.c.l.b16 %v96
  %v299 = vunpack.c.l.b16 %v97
  %v300 = vunpack.c.l.b16 %v98
  %v301 = vunpack.c.l.b16 %v99
  %v302 = vunpack.c.l.b16 %v100
  %v303 = vunpack.c.l.b16 %v101
  %v304 = vunpack.c.l.b16 %v102
  %v305 = vunpack.c.l.b16 %v103
  %v306 = vunpack.c.l.b16 %v104
  %v307 = vunpack.c.l.b16 %v105
  %v308 = vunpack.c.l.b16 %v106
  %v309 = vunpack.c.l.b16 %v107
  %v310 = vunpack.c.l.b16 %v108
  %v311 = vunpack.c.l.b16 %v109
  %v312 = vunpack.c.l.b16 %v110
  %v313 = vunpack.c.l.b16 %v111
  %v314 = vunpack.c.l.b16 %v112
  %v315 = vpack.c.b16 %v218, %v217
  %v316 = vpack.c.b16 %v220, %v219
  %v317 = vpack.c.b16 %v222, %v221
  %v318 = vpack.c.b16 %v224, %v223
  %v319 = vpack.c.b16 %v226, %v225
  %v320 = vpack.c.b16 %v228, %v227
  %v321 = vpack.c.b16 %v230, %v229
  %v322 = vpack.c.b16 %v232, %v231
  %v323 = vpack.c.b16 %v234, %v233
  %v324 = vpack.c.b16 %v236, %v235
  %v325 = vpack.c.b16 %v238, %v237
  %v326 = vpack.c.b16 %v240, %v239
  %v327 = vpack.c.b16 %v242, %v241
  %v328 = vpack.c.b16 %v244, %v243
  %v329 = vpack.c.b16 %v246, %v245
  %v330 = vpack.c.b16 %v248, %v247
  %v331 = vpack.c.b16 %v250, %v249
  %v332 = vpack.c.b16 %v252, %v251
  %v333 = vpack.c.b16 %v254, %v253
  %v334 = vpack.c.b16 %v256, %v255
  %v335 = vpack.c.b16 %v258, %v257
  %v336 = vpack.c.b16 %v260, %v259
  %v337 = vpack.c.b16 %v262, %v261
  %v338 = vpack.c.b16 %v264, %v263
  %v339 = vpack.c.b16 %v266, %v265
  %v340 = vpack.c.b16 %v268, %v267
  %v341 = vpack.c.b16 %v270, %v269
  %v342 = vpack.c.b16 %v272, %v271
  %v343 = vpack.c.b16 %v274, %v273
  %v344 = vpack.c.b16 %v276, %v275
  %v345 = vpack.c.b16 %v278, %v277
  %v346 = vpack.c.b16 %v280, %v279
  %v347 = vpack.c.b16 %v282, %v281
  %v348 = vpack.c.b16 %v284, %v283
  %v349 = vpack.c.b16 %v286, %v285
  %v350 = vpack.c.b16 %v288, %v287
  %v351 = vpack.c.b16 %v290, %v289
  %v352 = vpack.c.b16 %v292, %v291
  %v353 = vpack.c.b16 %v294, %v293
  %v354 = vpack.c.b16 %v296, %v295
  %v355 = vpack.c.b16 %v298, %v297
  %v356 = vpack.c.b16 %v300, %v299
  %v357 = vpack.c.b16 %v302, %v301
  %v358 = vpack.c.b16 %v304, %v303
  %v359 = vpack.c.b16 %v306, %v305
  %v360 = vpack.c.b16 %v308, %v307
  %v361 = vpack.c.b16 %v310, %v309
  %v362 = vpack.c.b16 %v312, %v311
  %v363 = vpack.c.b16 %v314, %v313
  %v366 = vunpack.c.l.b16 %v113
  %v367 = vunpack.c.l.b16 %v114
  %v368 = vpack.c.b16 %v367, %v366
  %vm369 = vcmask 72704
  %v371 = vsel %vm369, %v315, 0
  %v374 = vsel %vm369, %v316, 0
  %v377 = vsel %vm369, %v317, 0
  %v380 = vsel %vm369, %v318, 0
  %v383 = vsel %vm369, %v319, 0
  %v386 = vsel %vm369, %v320, 0
  %v389 = vsel %vm369, %v321, 0
  %v392 = vsel %vm369, %v322, 0
  %v395 = vsel %vm369, %v323, 0
  %v398 = vsel %vm369, %v324, 0
  %v401 = vsel %vm369, %v325, 0
  %v404 = vsel %vm369, %v326, 0
  %v407 = vsel %vm369, %v327, 0
  %v410 = vsel %vm369, %v328, 0
  %v413 = vsel %vm369, %v329, 0
  %v416 = vsel %vm369, %v330, 0
  %v419 = vsel %vm369, %v331, 0
  %v422 = vsel %vm369, %v332, 0
  %v425 = vsel %vm369, %v333, 0
  %v428 = vsel %vm369, %v334, 0
  %v431 = vsel %vm369, %v335, 0
  %v434 = vsel %vm369, %v336, 0
  %v437 = vsel %vm369, %v337, 0
  %v440 = vsel %vm369, %v338, 0
  %v443 = vsel %vm369, %v339, 0
  %v446 = vsel %vm369, %v340, 0
  %v449 = vsel %vm369, %v341, 0
  %v452 = vsel %vm369, %v342, 0
  %v455 = vsel %vm369, %v343, 0
  %v458 = vsel %vm369, %v344, 0
  %v461 = vsel %vm369, %v345, 0
  %v464 = vsel %vm369, %v346, 0
  %v467 = vsel %vm369, %v347, 0
  %v470 = vsel %vm369, %v348, 0
  %v473 = vsel %vm369, %v349, 0
  %v476 = vsel %vm369, %v350, 0
  %v479 = vsel %vm369, %v351, 0
  %v482 = vsel %vm369, %v352, 0
  %v485 = vsel %vm369, %v353, 0
  %v488 = vsel %vm369, %v354, 0
  %v491 = vsel %vm369, %v355, 0
  %v494 = vsel %vm369, %v356, 0
  %v497 = vsel %vm369, %v357, 0
  %v500 = vsel %vm369, %v358, 0
  %v503 = vsel %vm369, %v359, 0
  %v506 = vsel %vm369, %v360, 0
  %v509 = vsel %vm369, %v361, 0
  %v512 = vsel %vm369, %v362, 0
  %v515 = vsel %vm369, %v363, 0
  %vm517 = vcmask 1043456
  %vm518 = vcmask 1044480
  %v519 = vsel %vm517, 4294967295, 65535
  %v520 = vsel %vm518, %v519, 0
  %v522 = vand.u32 %v368, %v520
  %524 = vmatpush.bf16.msra.mxu0 0
  %525 = vmatpush.bf16.msra.mxu0 0
  %526 = vmatpush.bf16.msra.mxu0 0
  %527 = vmatpush.bf16.msra.mxu0 0
  %528 = vmatpush.bf16.msra.mxu0 0
  %529 = vmatpush.bf16.msra.mxu0 0
  %530 = vmatpush.bf16.msra.mxu0 0
  %531 = vmatpush.bf16.msra.mxu0 %v522
  %532 = vmatmul.bf16.gmra.mxu0 %v371
  %v533 = vpop.f32.mrf.mxu0
  %v534 = vadd.f32 %v117, %v533
  %v535 = vpop.f32.mrf.mxu0
  %v536 = vadd.f32 %v117, %v535
  %537 = vmatmul.bf16.gmra.mxu0 %v374
  %v538 = vpop.f32.mrf.mxu0
  %v539 = vadd.f32 %v117, %v538
  %v540 = vpop.f32.mrf.mxu0
  %v541 = vadd.f32 %v117, %v540
  %542 = vmatmul.bf16.gmra.mxu0 %v377
  %v543 = vpop.f32.mrf.mxu0
  %v544 = vadd.f32 %v117, %v543
  %v545 = vpop.f32.mrf.mxu0
  %v546 = vadd.f32 %v117, %v545
  %547 = vmatmul.bf16.gmra.mxu0 %v380
  %v548 = vpop.f32.mrf.mxu0
  %v549 = vadd.f32 %v117, %v548
  %v550 = vpop.f32.mrf.mxu0
  %v551 = vadd.f32 %v117, %v550
  %552 = vmatmul.bf16.gmra.mxu0 %v383
  %v553 = vpop.f32.mrf.mxu0
  %v554 = vadd.f32 %v117, %v553
  %v555 = vpop.f32.mrf.mxu0
  %v556 = vadd.f32 %v117, %v555
  %557 = vmatmul.bf16.gmra.mxu0 %v386
  %v558 = vpop.f32.mrf.mxu0
  %v559 = vadd.f32 %v117, %v558
  %v560 = vpop.f32.mrf.mxu0
  %v561 = vadd.f32 %v117, %v560
  %562 = vmatmul.bf16.gmra.mxu0 %v389
  %v563 = vpop.f32.mrf.mxu0
  %v564 = vadd.f32 %v117, %v563
  %v565 = vpop.f32.mrf.mxu0
  %v566 = vadd.f32 %v117, %v565
  %567 = vmatmul.bf16.gmra.mxu0 %v392
  %v568 = vpop.f32.mrf.mxu0
  %v569 = vadd.f32 %v117, %v568
  %v570 = vpop.f32.mrf.mxu0
  %v571 = vadd.f32 %v117, %v570
  %572 = vmatmul.bf16.gmra.mxu0 %v395
  %v573 = vpop.f32.mrf.mxu0
  %v574 = vadd.f32 %v117, %v573
  %v575 = vpop.f32.mrf.mxu0
  %v576 = vadd.f32 %v117, %v575
  %577 = vmatmul.bf16.gmra.mxu0 %v398
  %v578 = vpop.f32.mrf.mxu0
  %v579 = vadd.f32 %v117, %v578
  %v580 = vpop.f32.mrf.mxu0
  %v581 = vadd.f32 %v117, %v580
  %582 = vmatmul.bf16.gmra.mxu0 %v401
  %v583 = vpop.f32.mrf.mxu0
  %v584 = vadd.f32 %v117, %v583
  %v585 = vpop.f32.mrf.mxu0
  %v586 = vadd.f32 %v117, %v585
  %587 = vmatmul.bf16.gmra.mxu0 %v404
  %v588 = vpop.f32.mrf.mxu0
  %v589 = vadd.f32 %v117, %v588
  %v590 = vpop.f32.mrf.mxu0
  %v591 = vadd.f32 %v117, %v590
  %592 = vmatmul.bf16.gmra.mxu0 %v407
  %v593 = vpop.f32.mrf.mxu0
  %v594 = vadd.f32 %v117, %v593
  %v595 = vpop.f32.mrf.mxu0
  %v596 = vadd.f32 %v117, %v595
  %597 = vmatmul.bf16.gmra.mxu0 %v410
  %v598 = vpop.f32.mrf.mxu0
  %v599 = vadd.f32 %v117, %v598
  %v600 = vpop.f32.mrf.mxu0
  %v601 = vadd.f32 %v117, %v600
  %602 = vmatmul.bf16.gmra.mxu0 %v413
  %v603 = vpop.f32.mrf.mxu0
  %v604 = vadd.f32 %v117, %v603
  %v605 = vpop.f32.mrf.mxu0
  %v606 = vadd.f32 %v117, %v605
  %607 = vmatmul.bf16.gmra.mxu0 %v416
  %v608 = vpop.f32.mrf.mxu0
  %v609 = vadd.f32 %v117, %v608
  %v610 = vpop.f32.mrf.mxu0
  %v611 = vadd.f32 %v117, %v610
  %612 = vmatmul.bf16.gmra.mxu0 %v419
  %v613 = vpop.f32.mrf.mxu0
  %v614 = vadd.f32 %v117, %v613
  %v615 = vpop.f32.mrf.mxu0
  %v616 = vadd.f32 %v117, %v615
  %617 = vmatmul.bf16.gmra.mxu0 %v422
  %v618 = vpop.f32.mrf.mxu0
  %v619 = vadd.f32 %v117, %v618
  %v620 = vpop.f32.mrf.mxu0
  %v621 = vadd.f32 %v117, %v620
  %622 = vmatmul.bf16.gmra.mxu0 %v425
  %v623 = vpop.f32.mrf.mxu0
  %v624 = vadd.f32 %v117, %v623
  %v625 = vpop.f32.mrf.mxu0
  %v626 = vadd.f32 %v117, %v625
  %627 = vmatmul.bf16.gmra.mxu0 %v428
  %v628 = vpop.f32.mrf.mxu0
  %v629 = vadd.f32 %v117, %v628
  %v630 = vpop.f32.mrf.mxu0
  %v631 = vadd.f32 %v117, %v630
  %632 = vmatmul.bf16.gmra.mxu0 %v431
  %v633 = vpop.f32.mrf.mxu0
  %v634 = vadd.f32 %v117, %v633
  %v635 = vpop.f32.mrf.mxu0
  %v636 = vadd.f32 %v117, %v635
  %637 = vmatmul.bf16.gmra.mxu0 %v434
  %v638 = vpop.f32.mrf.mxu0
  %v639 = vadd.f32 %v117, %v638
  %v640 = vpop.f32.mrf.mxu0
  %v641 = vadd.f32 %v117, %v640
  %642 = vmatmul.bf16.gmra.mxu0 %v437
  %v643 = vpop.f32.mrf.mxu0
  %v644 = vadd.f32 %v117, %v643
  %v645 = vpop.f32.mrf.mxu0
  %v646 = vadd.f32 %v117, %v645
  %647 = vmatmul.bf16.gmra.mxu0 %v440
  %v648 = vpop.f32.mrf.mxu0
  %v649 = vadd.f32 %v117, %v648
  %v650 = vpop.f32.mrf.mxu0
  %v651 = vadd.f32 %v117, %v650
  %652 = vmatmul.bf16.gmra.mxu0 %v443
  %v653 = vpop.f32.mrf.mxu0
  %v654 = vadd.f32 %v117, %v653
  %v655 = vpop.f32.mrf.mxu0
  %v656 = vadd.f32 %v117, %v655
  %657 = vmatmul.bf16.gmra.mxu0 %v446
  %v658 = vpop.f32.mrf.mxu0
  %v659 = vadd.f32 %v117, %v658
  %v660 = vpop.f32.mrf.mxu0
  %v661 = vadd.f32 %v117, %v660
  %662 = vmatmul.bf16.gmra.mxu0 %v449
  %v663 = vpop.f32.mrf.mxu0
  %v664 = vadd.f32 %v117, %v663
  %v665 = vpop.f32.mrf.mxu0
  %v666 = vadd.f32 %v117, %v665
  %667 = vmatmul.bf16.gmra.mxu0 %v452
  %v668 = vpop.f32.mrf.mxu0
  %v669 = vadd.f32 %v117, %v668
  %v670 = vpop.f32.mrf.mxu0
  %v671 = vadd.f32 %v117, %v670
  %672 = vmatmul.bf16.gmra.mxu0 %v455
  %v673 = vpop.f32.mrf.mxu0
  %v674 = vadd.f32 %v117, %v673
  %v675 = vpop.f32.mrf.mxu0
  %v676 = vadd.f32 %v117, %v675
  %677 = vmatmul.bf16.gmra.mxu0 %v458
  %v678 = vpop.f32.mrf.mxu0
  %v679 = vadd.f32 %v117, %v678
  %v680 = vpop.f32.mrf.mxu0
  %v681 = vadd.f32 %v117, %v680
  %682 = vmatmul.bf16.gmra.mxu0 %v461
  %v683 = vpop.f32.mrf.mxu0
  %v684 = vadd.f32 %v117, %v683
  %v685 = vpop.f32.mrf.mxu0
  %v686 = vadd.f32 %v117, %v685
  %687 = vmatmul.bf16.gmra.mxu0 %v464
  %v688 = vpop.f32.mrf.mxu0
  %v689 = vadd.f32 %v117, %v688
  %v690 = vpop.f32.mrf.mxu0
  %v691 = vadd.f32 %v117, %v690
  %692 = vmatmul.bf16.gmra.mxu0 %v467
  %v693 = vpop.f32.mrf.mxu0
  %v694 = vadd.f32 %v117, %v693
  %v695 = vpop.f32.mrf.mxu0
  %v696 = vadd.f32 %v117, %v695
  %697 = vmatmul.bf16.gmra.mxu0 %v470
  %v698 = vpop.f32.mrf.mxu0
  %v699 = vadd.f32 %v117, %v698
  %v700 = vpop.f32.mrf.mxu0
  %v701 = vadd.f32 %v117, %v700
  %702 = vmatmul.bf16.gmra.mxu0 %v473
  %v703 = vpop.f32.mrf.mxu0
  %v704 = vadd.f32 %v117, %v703
  %v705 = vpop.f32.mrf.mxu0
  %v706 = vadd.f32 %v117, %v705
  %707 = vmatmul.bf16.gmra.mxu0 %v476
  %v708 = vpop.f32.mrf.mxu0
  %v709 = vadd.f32 %v117, %v708
  %v710 = vpop.f32.mrf.mxu0
  %v711 = vadd.f32 %v117, %v710
  %712 = vmatmul.bf16.gmra.mxu0 %v479
  %v713 = vpop.f32.mrf.mxu0
  %v714 = vadd.f32 %v117, %v713
  %v715 = vpop.f32.mrf.mxu0
  %v716 = vadd.f32 %v117, %v715
  %717 = vmatmul.bf16.gmra.mxu0 %v482
  %v718 = vpop.f32.mrf.mxu0
  %v719 = vadd.f32 %v117, %v718
  %v720 = vpop.f32.mrf.mxu0
  %v721 = vadd.f32 %v117, %v720
  %722 = vmatmul.bf16.gmra.mxu0 %v485
  %v723 = vpop.f32.mrf.mxu0
  %v724 = vadd.f32 %v117, %v723
  %v725 = vpop.f32.mrf.mxu0
  %v726 = vadd.f32 %v117, %v725
  %727 = vmatmul.bf16.gmra.mxu0 %v488
  %v728 = vpop.f32.mrf.mxu0
  %v729 = vadd.f32 %v117, %v728
  %v730 = vpop.f32.mrf.mxu0
  %v731 = vadd.f32 %v117, %v730
  %732 = vmatmul.bf16.gmra.mxu0 %v491
  %v733 = vpop.f32.mrf.mxu0
  %v734 = vadd.f32 %v117, %v733
  %v735 = vpop.f32.mrf.mxu0
  %v736 = vadd.f32 %v117, %v735
  %737 = vmatmul.bf16.gmra.mxu0 %v494
  %v738 = vpop.f32.mrf.mxu0
  %v739 = vadd.f32 %v117, %v738
  %v740 = vpop.f32.mrf.mxu0
  %v741 = vadd.f32 %v117, %v740
  %742 = vmatmul.bf16.gmra.mxu0 %v497
  %v743 = vpop.f32.mrf.mxu0
  %v744 = vadd.f32 %v117, %v743
  %v745 = vpop.f32.mrf.mxu0
  %v746 = vadd.f32 %v117, %v745
  %747 = vmatmul.bf16.gmra.mxu0 %v500
  %v748 = vpop.f32.mrf.mxu0
  %v749 = vadd.f32 %v117, %v748
  %v750 = vpop.f32.mrf.mxu0
  %v751 = vadd.f32 %v117, %v750
  %752 = vmatmul.bf16.gmra.mxu0 %v503
  %v753 = vpop.f32.mrf.mxu0
  %v754 = vadd.f32 %v117, %v753
  %v755 = vpop.f32.mrf.mxu0
  %v756 = vadd.f32 %v117, %v755
  %757 = vmatmul.bf16.gmra.mxu0 %v506
  %v758 = vpop.f32.mrf.mxu0
  %v759 = vadd.f32 %v117, %v758
  %v760 = vpop.f32.mrf.mxu0
  %v761 = vadd.f32 %v117, %v760
  %762 = vmatmul.bf16.gmra.mxu0 %v509
  %v763 = vpop.f32.mrf.mxu0
  %v764 = vadd.f32 %v117, %v763
  %v765 = vpop.f32.mrf.mxu0
  %v766 = vadd.f32 %v117, %v765
  %767 = vmatmul.bf16.gmra.mxu0 %v512
  %v768 = vpop.f32.mrf.mxu0
  %v769 = vadd.f32 %v117, %v768
  %v770 = vpop.f32.mrf.mxu0
  %v771 = vadd.f32 %v117, %v770
  %772 = vmatmul.bf16.gmra.mxu0 %v515
  %v773 = vpop.f32.mrf.mxu0
  %v774 = vadd.f32 %v117, %v773
  %v775 = vpop.f32.mrf.mxu0
  %v776 = vadd.f32 %v117, %v775
  %777 = vdwg.mxu0
  %v778 = vmax.f32 %v534, 0.0
  %v779 = vmax.f32 %v536, 0.0
  %v780 = vmax.f32 %v539, 0.0
  %v781 = vmax.f32 %v541, 0.0
  %v782 = vmax.f32 %v544, 0.0
  %v783 = vmax.f32 %v546, 0.0
  %v784 = vmax.f32 %v549, 0.0
  %v785 = vmax.f32 %v551, 0.0
  %v786 = vmax.f32 %v554, 0.0
  %v787 = vmax.f32 %v556, 0.0
  %v788 = vmax.f32 %v559, 0.0
  %v789 = vmax.f32 %v561, 0.0
  %v790 = vmax.f32 %v564, 0.0
  %v791 = vmax.f32 %v566, 0.0
  %v792 = vmax.f32 %v569, 0.0
  %v793 = vmax.f32 %v571, 0.0
  %v794 = vmax.f32 %v574, 0.0
  %v795 = vmax.f32 %v576, 0.0
  %v796 = vmax.f32 %v579, 0.0
  %v797 = vmax.f32 %v581, 0.0
  %v798 = vmax.f32 %v584, 0.0
  %v799 = vmax.f32 %v586, 0.0
  %v800 = vmax.f32 %v589, 0.0
  %v801 = vmax.f32 %v591, 0.0
  %v802 = vmax.f32 %v594, 0.0
  %v803 = vmax.f32 %v596, 0.0
  %v804 = vmax.f32 %v599, 0.0
  %v805 = vmax.f32 %v601, 0.0
  %v806 = vmax.f32 %v604, 0.0
  %v807 = vmax.f32 %v606, 0.0
  %v808 = vmax.f32 %v609, 0.0
  %v809 = vmax.f32 %v611, 0.0
  %v810 = vmax.f32 %v614, 0.0
  %v811 = vmax.f32 %v616, 0.0
  %v812 = vmax.f32 %v619, 0.0
  %v813 = vmax.f32 %v621, 0.0
  %v814 = vmax.f32 %v624, 0.0
  %v815 = vmax.f32 %v626, 0.0
  %v816 = vmax.f32 %v629, 0.0
  %v817 = vmax.f32 %v631, 0.0
  %v818 = vmax.f32 %v634, 0.0
  %v819 = vmax.f32 %v636, 0.0
  %v820 = vmax.f32 %v639, 0.0
  %v821 = vmax.f32 %v641, 0.0
  %v822 = vmax.f32 %v644, 0.0
  %v823 = vmax.f32 %v646, 0.0
  %v824 = vmax.f32 %v649, 0.0
  %v825 = vmax.f32 %v651, 0.0
  %v826 = vmax.f32 %v654, 0.0
  %v827 = vmax.f32 %v656, 0.0
  %v828 = vmax.f32 %v659, 0.0
  %v829 = vmax.f32 %v661, 0.0
  %v830 = vmax.f32 %v664, 0.0
  %v831 = vmax.f32 %v666, 0.0
  %v832 = vmax.f32 %v669, 0.0
  %v833 = vmax.f32 %v671, 0.0
  %v834 = vmax.f32 %v674, 0.0
  %v835 = vmax.f32 %v676, 0.0
  %v836 = vmax.f32 %v679, 0.0
  %v837 = vmax.f32 %v681, 0.0
  %v838 = vmax.f32 %v684, 0.0
  %v839 = vmax.f32 %v686, 0.0
  %v840 = vmax.f32 %v689, 0.0
  %v841 = vmax.f32 %v691, 0.0
  %v842 = vmax.f32 %v694, 0.0
  %v843 = vmax.f32 %v696, 0.0
  %v844 = vmax.f32 %v699, 0.0
  %v845 = vmax.f32 %v701, 0.0
  %v846 = vmax.f32 %v704, 0.0
  %v847 = vmax.f32 %v706, 0.0
  %v848 = vmax.f32 %v709, 0.0
  %v849 = vmax.f32 %v711, 0.0
  %v850 = vmax.f32 %v714, 0.0
  %v851 = vmax.f32 %v716, 0.0
  %v852 = vmax.f32 %v719, 0.0
  %v853 = vmax.f32 %v721, 0.0
  %v854 = vmax.f32 %v724, 0.0
  %v855 = vmax.f32 %v726, 0.0
  %v856 = vmax.f32 %v729, 0.0
  %v857 = vmax.f32 %v731, 0.0
  %v858 = vmax.f32 %v734, 0.0
  %v859 = vmax.f32 %v736, 0.0
  %v860 = vmax.f32 %v739, 0.0
  %v861 = vmax.f32 %v741, 0.0
  %v862 = vmax.f32 %v744, 0.0
  %v863 = vmax.f32 %v746, 0.0
  %v864 = vmax.f32 %v749, 0.0
  %v865 = vmax.f32 %v751, 0.0
  %v866 = vmax.f32 %v754, 0.0
  %v867 = vmax.f32 %v756, 0.0
  %v868 = vmax.f32 %v759, 0.0
  %v869 = vmax.f32 %v761, 0.0
  %v870 = vmax.f32 %v764, 0.0
  %v871 = vmax.f32 %v766, 0.0
  %v872 = vmax.f32 %v769, 0.0
  %v873 = vmax.f32 %v771, 0.0
  %v874 = vmax.f32 %v774, 0.0
  %v875 = vmax.f32 %v776, 0.0
  %876 = vst [vmem:[%s3] sm:$0xff] %v778
  %877 = vst [vmem:[%s3 + $0x8] sm:$0xff] %v779
  %878 = vst [vmem:[%s3 + $0x10] sm:$0xff] %v780
  %879 = vst [vmem:[%s3 + $0x18] sm:$0xff] %v781
  %880 = vst [vmem:[%s3 + $0x20] sm:$0xff] %v782
  %881 = vst [vmem:[%s3 + $0x28] sm:$0xff] %v783
  %882 = vst [vmem:[%s3 + $0x30] sm:$0xff] %v784
  %883 = vst [vmem:[%s3 + $0x38] sm:$0xff] %v785
  %884 = vst [vmem:[%s3 + $0x40] sm:$0xff] %v786
  %885 = vst [vmem:[%s3 + $0x48] sm:$0xff] %v787
  %886 = vst [vmem:[%s3 + $0x50] sm:$0xff] %v788
  %887 = vst [vmem:[%s3 + $0x58] sm:$0xff] %v789
  %888 = vst [vmem:[%s3 + $0x60] sm:$0xff] %v790
  %889 = vst [vmem:[%s3 + $0x68] sm:$0xff] %v791
  %890 = vst [vmem:[%s3 + $0x70] sm:$0xff] %v792
  %891 = vst [vmem:[%s3 + $0x78] sm:$0xff] %v793
  %892 = vst [vmem:[%s3 + $0x80] sm:$0xff] %v794
  %893 = vst [vmem:[%s3 + $0x88] sm:$0xff] %v795
  %894 = vst [vmem:[%s3 + $0x90] sm:$0xff] %v796
  %895 = vst [vmem:[%s3 + $0x98] sm:$0xff] %v797
  %896 = vst [vmem:[%s3 + $0xa0] sm:$0xff] %v798
  %897 = vst [vmem:[%s3 + $0xa8] sm:$0xff] %v799
  %898 = vst [vmem:[%s3 + $0xb0] sm:$0xff] %v800
  %899 = vst [vmem:[%s3 + $0xb8] sm:$0xff] %v801
  %900 = vst [vmem:[%s3 + $0xc0] sm:$0xff] %v802
  %901 = vst [vmem:[%s3 + $0xc8] sm:$0xff] %v803
  %902 = vst [vmem:[%s3 + $0xd0] sm:$0xff] %v804
  %903 = vst [vmem:[%s3 + $0xd8] sm:$0xff] %v805
  %904 = vst [vmem:[%s3 + $0xe0] sm:$0xff] %v806
  %905 = vst [vmem:[%s3 + $0xe8] sm:$0xff] %v807
  %906 = vst [vmem:[%s3 + $0xf0] sm:$0xff] %v808
  %907 = vst [vmem:[%s3 + $0xf8] sm:$0xff] %v809
  %908 = vst [vmem:[%s3 + $0x100] sm:$0xff] %v810
  %909 = vst [vmem:[%s3 + $0x108] sm:$0xff] %v811
  %910 = vst [vmem:[%s3 + $0x110] sm:$0xff] %v812
  %911 = vst [vmem:[%s3 + $0x118] sm:$0xff] %v813
  %912 = vst [vmem:[%s3 + $0x120] sm:$0xff] %v814
  %913 = vst [vmem:[%s3 + $0x128] sm:$0xff] %v815
  %914 = vst [vmem:[%s3 + $0x130] sm:$0xff] %v816
  %915 = vst [vmem:[%s3 + $0x138] sm:$0xff] %v817
  %916 = vst [vmem:[%s3 + $0x140] sm:$0xff] %v818
  %917 = vst [vmem:[%s3 + $0x148] sm:$0xff] %v819
  %918 = vst [vmem:[%s3 + $0x150] sm:$0xff] %v820
  %919 = vst [vmem:[%s3 + $0x158] sm:$0xff] %v821
  %920 = vst [vmem:[%s3 + $0x160] sm:$0xff] %v822
  %921 = vst [vmem:[%s3 + $0x168] sm:$0xff] %v823
  %922 = vst [vmem:[%s3 + $0x170] sm:$0xff] %v824
  %923 = vst [vmem:[%s3 + $0x178] sm:$0xff] %v825
  %924 = vst [vmem:[%s3 + $0x180] sm:$0xff] %v826
  %925 = vst [vmem:[%s3 + $0x188] sm:$0xff] %v827
  %926 = vst [vmem:[%s3 + $0x190] sm:$0xff] %v828
  %927 = vst [vmem:[%s3 + $0x198] sm:$0xff] %v829
  %928 = vst [vmem:[%s3 + $0x1a0] sm:$0xff] %v830
  %929 = vst [vmem:[%s3 + $0x1a8] sm:$0xff] %v831
  %930 = vst [vmem:[%s3 + $0x1b0] sm:$0xff] %v832
  %931 = vst [vmem:[%s3 + $0x1b8] sm:$0xff] %v833
  %932 = vst [vmem:[%s3 + $0x1c0] sm:$0xff] %v834
  %933 = vst [vmem:[%s3 + $0x1c8] sm:$0xff] %v835
  %934 = vst [vmem:[%s3 + $0x1d0] sm:$0xff] %v836
  %935 = vst [vmem:[%s3 + $0x1d8] sm:$0xff] %v837
  %936 = vst [vmem:[%s3 + $0x1e0] sm:$0xff] %v838
  %937 = vst [vmem:[%s3 + $0x1e8] sm:$0xff] %v839
  %938 = vst [vmem:[%s3 + $0x1f0] sm:$0xff] %v840
  %939 = vst [vmem:[%s3 + $0x1f8] sm:$0xff] %v841
  %940 = vst [vmem:[%s3 + $0x200] sm:$0xff] %v842
  %941 = vst [vmem:[%s3 + $0x208] sm:$0xff] %v843
  %942 = vst [vmem:[%s3 + $0x210] sm:$0xff] %v844
  %943 = vst [vmem:[%s3 + $0x218] sm:$0xff] %v845
  %944 = vst [vmem:[%s3 + $0x220] sm:$0xff] %v846
  %945 = vst [vmem:[%s3 + $0x228] sm:$0xff] %v847
  %946 = vst [vmem:[%s3 + $0x230] sm:$0xff] %v848
  %947 = vst [vmem:[%s3 + $0x238] sm:$0xff] %v849
  %948 = vst [vmem:[%s3 + $0x240] sm:$0xff] %v850
  %949 = vst [vmem:[%s3 + $0x248] sm:$0xff] %v851
  %950 = vst [vmem:[%s3 + $0x250] sm:$0xff] %v852
  %951 = vst [vmem:[%s3 + $0x258] sm:$0xff] %v853
  %952 = vst [vmem:[%s3 + $0x260] sm:$0xff] %v854
  %953 = vst [vmem:[%s3 + $0x268] sm:$0xff] %v855
  %954 = vst [vmem:[%s3 + $0x270] sm:$0xff] %v856
  %955 = vst [vmem:[%s3 + $0x278] sm:$0xff] %v857
  %956 = vst [vmem:[%s3 + $0x280] sm:$0xff] %v858
  %957 = vst [vmem:[%s3 + $0x288] sm:$0xff] %v859
  %958 = vst [vmem:[%s3 + $0x290] sm:$0xff] %v860
  %959 = vst [vmem:[%s3 + $0x298] sm:$0xff] %v861
  %960 = vst [vmem:[%s3 + $0x2a0] sm:$0xff] %v862
  %961 = vst [vmem:[%s3 + $0x2a8] sm:$0xff] %v863
  %962 = vst [vmem:[%s3 + $0x2b0] sm:$0xff] %v864
  %963 = vst [vmem:[%s3 + $0x2b8] sm:$0xff] %v865
  %964 = vst [vmem:[%s3 + $0x2c0] sm:$0xff] %v866
  %965 = vst [vmem:[%s3 + $0x2c8] sm:$0xff] %v867
  %966 = vst [vmem:[%s3 + $0x2d0] sm:$0xff] %v868
  %967 = vst [vmem:[%s3 + $0x2d8] sm:$0xff] %v869
  %968 = vst [vmem:[%s3 + $0x2e0] sm:$0xff] %v870
  %969 = vst [vmem:[%s3 + $0x2e8] sm:$0xff] %v871
  %970 = vst [vmem:[%s3 + $0x2f0] sm:$0xff] %v872
  %971 = vst [vmem:[%s3 + $0x2f8] sm:$0xff] %v873
  %972 = vst [vmem:[%s3 + $0x300] sm:$0xff] %v874
  %973 = vst [vmem:[%s3 + $0x308] sm:$0xff] %v875
  // Predicated region
  $region14: #{model_forward.3} parent=0 // pred_check
    _
  $region15: #{model_forward.3} parent=0 // pred_check_branch
    %975 = sbr.rel (0) target = $region17
  $region16: #{model_forward.3} parent=0 // pred_region
    _
  $region17: #{model_forward.3} parent=0 // pred_fallthru
    _
  // Predicated region
  $region18: #{model_forward.3} parent=0 // pred_check
    _
  $region19: #{model_forward.3} parent=0 // pred_check_branch
    %977 = sbr.rel (0) target = $region21
  $region20: #{model_forward.3} parent=0 // pred_region
    _
  $region21: #{model_forward.3} parent=0 // pred_fallthru
    _

// kernel: model_forward.4
$region0: #{model_forward.4}
  #allocation0 [shape = 'u32[]', space=smem, size = 0x4, offset = 0x4, fixed_abs, tag = 'smem constant byte address 0x4 - core index']
  #allocation1 [shape = 'u32[72,128]{1,0:T(1,128)}', space=vmem, size = 0x9000, scoped, tag = 'internal scratch']
  %s0 = inlined_call_operand.vmem [shape: bf16[196,144], index: 0, kind: input, shape index: {}]
  %s1 = inlined_call_operand.vmem [shape: bf16[144,128], index: 1, kind: input, shape index: {}]
  %s2 = inlined_call_operand.vmem [shape: f32[1,128], index: 2, kind: input, shape index: {}]
  %s3 = inlined_call_operand.vmem [shape: f32[196,128], index: 3, kind: output, shape index: {}]
  %s4 = sld [smem:[#allocation0]]
  $region22: #{model_forward.4} parent=0
    _
  %s6 = ssub.s32 1, %s4
  %s7 = scalar_select 0, %s6, %s4
  // Predicated region
  $region2: #{model_forward.4} parent=0 // pred_check
    _
  $region3: #{model_forward.4} parent=0 // pred_check_branch
    %9 = sbr.rel (0) target = $region5
  $region4: #{model_forward.4} parent=0 // pred_region
    _
  $region5: #{model_forward.4} parent=0 // pred_fallthru
    _
  // Predicated region
  $region6: #{model_forward.4} parent=0 // pred_check
    _
  $region7: #{model_forward.4} parent=0 // pred_check_branch
    %11 = sbr.rel (0) target = $region9
  $region8: #{model_forward.4} parent=0 // pred_region
    _
  $region9: #{model_forward.4} parent=0 // pred_fallthru
    _
  // Predicated region
  $region10: #{model_forward.4} parent=0 // pred_check
    _
  $region11: #{model_forward.4} parent=0 // pred_check_branch
    %13 = sbr.rel (0) target = $region13
  $region12: #{model_forward.4} parent=0 // pred_region
    _
  $region13: #{model_forward.4} parent=0 // pred_fallthru
    _
  %v15 = vld [vmem:[%s0] sm:$0xff]
  %v16 = vld [vmem:[%s0 + $0x8] sm:$0xff]
  %v17 = vld [vmem:[%s0 + $0x10] sm:$0xff]
  %v18 = vld [vmem:[%s0 + $0x18] sm:$0xff]
  %v19 = vld [vmem:[%s0 + $0x20] sm:$0xff]
  %v20 = vld [vmem:[%s0 + $0x28] sm:$0xff]
  %v21 = vld [vmem:[%s0 + $0x30] sm:$0xff]
  %v22 = vld [vmem:[%s0 + $0x38] sm:$0xff]
  %v23 = vld [vmem:[%s0 + $0x40] sm:$0xff]
  %v24 = vld [vmem:[%s0 + $0x48] sm:$0xff]
  %v25 = vld [vmem:[%s0 + $0x50] sm:$0xff]
  %v26 = vld [vmem:[%s0 + $0x58] sm:$0xff]
  %v27 = vld [vmem:[%s0 + $0x60] sm:$0xff]
  %v28 = vld [vmem:[%s0 + $0x68] sm:$0xff]
  %v29 = vld [vmem:[%s0 + $0x70] sm:$0xff]
  %v30 = vld [vmem:[%s0 + $0x78] sm:$0xff]
  %v31 = vld [vmem:[%s0 + $0x80] sm:$0xff]
  %v32 = vld [vmem:[%s0 + $0x88] sm:$0xff]
  %v33 = vld [vmem:[%s0 + $0x90] sm:$0xff]
  %v34 = vld [vmem:[%s0 + $0x98] sm:$0xff]
  %v35 = vld [vmem:[%s0 + $0xa0] sm:$0xff]
  %v36 = vld [vmem:[%s0 + $0xa8] sm:$0xff]
  %v37 = vld [vmem:[%s0 + $0xb0] sm:$0xff]
  %v38 = vld [vmem:[%s0 + $0xb8] sm:$0xff]
  %v39 = vld [vmem:[%s0 + $0xc0] sm:$0x33]
  %v40 = vld [vmem:[%s1] sm:$0xf]
  %v41 = vld [vmem:[%s1 + $0x4] sm:$0xf]
  %v42 = vld [vmem:[%s1 + $0x8] sm:$0xf]
  %v43 = vld [vmem:[%s1 + $0xc] sm:$0xf]
  %v44 = vld [vmem:[%s1 + $0x10] sm:$0xf]
  %v45 = vld [vmem:[%s1 + $0x14] sm:$0xf]
  %v46 = vld [vmem:[%s1 + $0x18] sm:$0xf]
  %v47 = vld [vmem:[%s1 + $0x1c] sm:$0xf]
  %v48 = vld [vmem:[%s1 + $0x20] sm:$0xf]
  %v49 = vld [vmem:[%s1 + $0x24] sm:$0xf]
  %v50 = vld [vmem:[%s1 + $0x28] sm:$0xf]
  %v51 = vld [vmem:[%s1 + $0x2c] sm:$0xf]
  %v52 = vld [vmem:[%s1 + $0x30] sm:$0xf]
  %v53 = vld [vmem:[%s1 + $0x34] sm:$0xf]
  %v54 = vld [vmem:[%s1 + $0x38] sm:$0xf]
  %v55 = vld [vmem:[%s1 + $0x3c] sm:$0xf]
  %v56 = vld [vmem:[%s1 + $0x40] sm:$0xf]
  %v57 = vld [vmem:[%s1 + $0x44] sm:$0xf]
  %v58 = vld [vmem:[%s2] sm:$0x1]
  %v60 = vperm.slane %v58, 0
  %v87 = vunpack.c.l.b16 %v15
  %v88 = vunpack.c.h.b16 %v15
  %v89 = vunpack.c.l.b16 %v16
  %v90 = vunpack.c.h.b16 %v16
  %v91 = vunpack.c.l.b16 %v17
  %v92 = vunpack.c.h.b16 %v17
  %v93 = vunpack.c.l.b16 %v18
  %v94 = vunpack.c.h.b16 %v18
  %v95 = vunpack.c.l.b16 %v19
  %v96 = vunpack.c.h.b16 %v19
  %v97 = vunpack.c.l.b16 %v20
  %v98 = vunpack.c.h.b16 %v20
  %v99 = vunpack.c.l.b16 %v21
  %v100 = vunpack.c.h.b16 %v21
  %v101 = vunpack.c.l.b16 %v22
  %v102 = vunpack.c.h.b16 %v22
  %v103 = vunpack.c.l.b16 %v23
  %v104 = vunpack.c.h.b16 %v23
  %v105 = vunpack.c.l.b16 %v24
  %v106 = vunpack.c.h.b16 %v24
  %v107 = vunpack.c.l.b16 %v25
  %v108 = vunpack.c.h.b16 %v25
  %v109 = vunpack.c.l.b16 %v26
  %v110 = vunpack.c.h.b16 %v26
  %v111 = vunpack.c.l.b16 %v27
  %v112 = vunpack.c.h.b16 %v27
  %v113 = vunpack.c.l.b16 %v28
  %v114 = vunpack.c.h.b16 %v28
  %v115 = vunpack.c.l.b16 %v29
  %v116 = vunpack.c.h.b16 %v29
  %v117 = vunpack.c.l.b16 %v30
  %v118 = vunpack.c.h.b16 %v30
  %v119 = vunpack.c.l.b16 %v31
  %v120 = vunpack.c.h.b16 %v31
  %v121 = vunpack.c.l.b16 %v32
  %v122 = vunpack.c.h.b16 %v32
  %v123 = vunpack.c.l.b16 %v33
  %v124 = vunpack.c.h.b16 %v33
  %v125 = vunpack.c.l.b16 %v34
  %v126 = vunpack.c.h.b16 %v34
  %v127 = vunpack.c.l.b16 %v35
  %v128 = vunpack.c.h.b16 %v35
  %v129 = vunpack.c.l.b16 %v36
  %v130 = vunpack.c.h.b16 %v36
  %v131 = vunpack.c.l.b16 %v37
  %v132 = vunpack.c.h.b16 %v37
  %v133 = vunpack.c.l.b16 %v38
  %v134 = vunpack.c.h.b16 %v38
  %v135 = vunpack.c.l.b16 %v39
  %v136 = vunpack.c.h.b16 %v39
  %v137 = vpack.c.b16 %v89, %v87
  %v138 = vpack.c.b16 %v90, %v88
  %v139 = vpack.c.b16 %v93, %v91
  %v140 = vpack.c.b16 %v94, %v92
  %v141 = vpack.c.b16 %v97, %v95
  %v142 = vpack.c.b16 %v98, %v96
  %v143 = vpack.c.b16 %v101, %v99
  %v144 = vpack.c.b16 %v102, %v100
  %v145 = vpack.c.b16 %v105, %v103
  %v146 = vpack.c.b16 %v106, %v104
  %v147 = vpack.c.b16 %v109, %v107
  %v148 = vpack.c.b16 %v110, %v108
  %v149 = vpack.c.b16 %v113, %v111
  %v150 = vpack.c.b16 %v114, %v112
  %v151 = vpack.c.b16 %v117, %v115
  %v152 = vpack.c.b16 %v118, %v116
  %v153 = vpack.c.b16 %v121, %v119
  %v154 = vpack.c.b16 %v122, %v120
  %v155 = vpack.c.b16 %v125, %v123
  %v156 = vpack.c.b16 %v126, %v124
  %v157 = vpack.c.b16 %v129, %v127
  %v158 = vpack.c.b16 %v130, %v128
  %v159 = vpack.c.b16 %v133, %v131
  %v160 = vpack.c.b16 %v134, %v132
  %v161 = vpack.c.b16 %v135, %v135
  %v162 = vpack.c.b16 %v136, %v136
  %v194 = vunpack.c.l.b16 %v40
  %v195 = vunpack.c.l.b16 %v41
  %v196 = vunpack.c.l.b16 %v42
  %v197 = vunpack.c.l.b16 %v43
  %v198 = vunpack.c.l.b16 %v44
  %v199 = vunpack.c.l.b16 %v45
  %v200 = vunpack.c.l.b16 %v46
  %v201 = vunpack.c.l.b16 %v47
  %v202 = vunpack.c.l.b16 %v48
  %v203 = vunpack.c.l.b16 %v49
  %v204 = vunpack.c.l.b16 %v50
  %v205 = vunpack.c.l.b16 %v51
  %v206 = vunpack.c.l.b16 %v52
  %v207 = vunpack.c.l.b16 %v53
  %v208 = vunpack.c.l.b16 %v54
  %v209 = vunpack.c.l.b16 %v55
  %v210 = vunpack.c.l.b16 %v56
  %v211 = vunpack.c.l.b16 %v57
  %v212 = vpack.c.b16 %v195, %v194
  %v213 = vpack.c.b16 %v197, %v196
  %v214 = vpack.c.b16 %v199, %v198
  %v215 = vpack.c.b16 %v201, %v200
  %v216 = vpack.c.b16 %v203, %v202
  %v217 = vpack.c.b16 %v205, %v204
  %v218 = vpack.c.b16 %v207, %v206
  %v219 = vpack.c.b16 %v209, %v208
  %v220 = vpack.c.b16 %v211, %v210
  %vm230 = vcmask 130048
  %v232 = vsel %vm230, %v138, 0
  %v235 = vsel %vm230, %v140, 0
  %v238 = vsel %vm230, %v142, 0
  %v241 = vsel %vm230, %v144, 0
  %v244 = vsel %vm230, %v146, 0
  %v247 = vsel %vm230, %v148, 0
  %v250 = vsel %vm230, %v150, 0
  %v253 = vsel %vm230, %v152, 0
  %v256 = vsel %vm230, %v154, 0
  %v259 = vsel %vm230, %v156, 0
  %v262 = vsel %vm230, %v158, 0
  %v265 = vsel %vm230, %v160, 0
  %v268 = vsel %vm230, %v162, 0
  %270 = vmatpush.bf16.msra.mxu0 %v219
  %271 = vmatpush.bf16.msra.mxu0 %v218
  %272 = vmatpush.bf16.msra.mxu0 %v217
  %273 = vmatpush.bf16.msra.mxu0 %v216
  %274 = vmatpush.bf16.msra.mxu0 %v215
  %275 = vmatpush.bf16.msra.mxu0 %v214
  %276 = vmatpush.bf16.msra.mxu0 %v213
  %277 = vmatpush.bf16.msra.mxu0 %v212
  %278 = vmatmul.bf16.gmra.mxu0 %v137
  %v279 = vpop.f32.mrf.mxu0
  %v280 = vadd.f32 %v60, %v279
  %v281 = vpop.f32.mrf.mxu0
  %v282 = vadd.f32 %v60, %v281
  %283 = vmatmul.bf16.gmra.mxu0 %v139
  %v284 = vpop.f32.mrf.mxu0
  %v285 = vadd.f32 %v60, %v284
  %v286 = vpop.f32.mrf.mxu0
  %v287 = vadd.f32 %v60, %v286
  %288 = vmatmul.bf16.gmra.mxu0 %v141
  %v289 = vpop.f32.mrf.mxu0
  %v290 = vadd.f32 %v60, %v289
  %v291 = vpop.f32.mrf.mxu0
  %v292 = vadd.f32 %v60, %v291
  %293 = vmatmul.bf16.gmra.mxu0 %v143
  %v294 = vpop.f32.mrf.mxu0
  %v295 = vadd.f32 %v60, %v294
  %v296 = vpop.f32.mrf.mxu0
  %v297 = vadd.f32 %v60, %v296
  %298 = vmatmul.bf16.gmra.mxu0 %v145
  %v299 = vpop.f32.mrf.mxu0
  %v300 = vadd.f32 %v60, %v299
  %v301 = vpop.f32.mrf.mxu0
  %v302 = vadd.f32 %v60, %v301
  %303 = vmatmul.bf16.gmra.mxu0 %v147
  %v304 = vpop.f32.mrf.mxu0
  %v305 = vadd.f32 %v60, %v304
  %v306 = vpop.f32.mrf.mxu0
  %v307 = vadd.f32 %v60, %v306
  %308 = vmatmul.bf16.gmra.mxu0 %v149
  %v309 = vpop.f32.mrf.mxu0
  %v310 = vadd.f32 %v60, %v309
  %v311 = vpop.f32.mrf.mxu0
  %v312 = vadd.f32 %v60, %v311
  %313 = vmatmul.bf16.gmra.mxu0 %v151
  %v314 = vpop.f32.mrf.mxu0
  %v315 = vadd.f32 %v60, %v314
  %v316 = vpop.f32.mrf.mxu0
  %v317 = vadd.f32 %v60, %v316
  %318 = vmatmul.bf16.gmra.mxu0 %v153
  %v319 = vpop.f32.mrf.mxu0
  %v320 = vadd.f32 %v60, %v319
  %v321 = vpop.f32.mrf.mxu0
  %v322 = vadd.f32 %v60, %v321
  %323 = vmatmul.bf16.gmra.mxu0 %v155
  %v324 = vpop.f32.mrf.mxu0
  %v325 = vadd.f32 %v60, %v324
  %v326 = vpop.f32.mrf.mxu0
  %v327 = vadd.f32 %v60, %v326
  %328 = vmatmul.bf16.gmra.mxu0 %v157
  %v329 = vpop.f32.mrf.mxu0
  %v330 = vadd.f32 %v60, %v329
  %v331 = vpop.f32.mrf.mxu0
  %v332 = vadd.f32 %v60, %v331
  %333 = vmatmul.bf16.gmra.mxu0 %v159
  %v334 = vpop.f32.mrf.mxu0
  %v335 = vadd.f32 %v60, %v334
  %v336 = vpop.f32.mrf.mxu0
  %v337 = vadd.f32 %v60, %v336
  %338 = vmatmul.bf16.gmra.mxu0 %v161
  %v339 = vpop.f32.mrf.mxu0
  %v340 = vadd.f32 %v60, %v339
  %v341 = vpop.f32.mrf.mxu0
  %342 = vdwg.mxu0
  %343 = vmatpush.bf16.msra.mxu0 0
  %344 = vmatpush.bf16.msra.mxu0 0
  %345 = vmatpush.bf16.msra.mxu0 0
  %346 = vmatpush.bf16.msra.mxu0 0
  %347 = vmatpush.bf16.msra.mxu0 0
  %348 = vmatpush.bf16.msra.mxu0 0
  %349 = vmatpush.bf16.msra.mxu0 0
  %350 = vmatpush.bf16.msra.mxu0 %v220
  %351 = vmatmul.bf16.gmra.mxu0 %v232
  %v352 = vpop.f32.mrf.mxu0
  %v353 = vadd.f32 %v280, %v352
  %v354 = vpop.f32.mrf.mxu0
  %v355 = vadd.f32 %v282, %v354
  %356 = vmatmul.bf16.gmra.mxu0 %v235
  %v357 = vpop.f32.mrf.mxu0
  %v358 = vadd.f32 %v285, %v357
  %v359 = vpop.f32.mrf.mxu0
  %v360 = vadd.f32 %v287, %v359
  %361 = vmatmul.bf16.gmra.mxu0 %v238
  %v362 = vpop.f32.mrf.mxu0
  %v363 = vadd.f32 %v290, %v362
  %v364 = vpop.f32.mrf.mxu0
  %v365 = vadd.f32 %v292, %v364
  %366 = vmatmul.bf16.gmra.mxu0 %v241
  %v367 = vpop.f32.mrf.mxu0
  %v368 = vadd.f32 %v295, %v367
  %v369 = vpop.f32.mrf.mxu0
  %v370 = vadd.f32 %v297, %v369
  %371 = vmatmul.bf16.gmra.mxu0 %v244
  %v372 = vpop.f32.mrf.mxu0
  %v373 = vadd.f32 %v300, %v372
  %v374 = vpop.f32.mrf.mxu0
  %v375 = vadd.f32 %v302, %v374
  %376 = vmatmul.bf16.gmra.mxu0 %v247
  %v377 = vpop.f32.mrf.mxu0
  %v378 = vadd.f32 %v305, %v377
  %v379 = vpop.f32.mrf.mxu0
  %v380 = vadd.f32 %v307, %v379
  %381 = vmatmul.bf16.gmra.mxu0 %v250
  %v382 = vpop.f32.mrf.mxu0
  %v383 = vadd.f32 %v310, %v382
  %v384 = vpop.f32.mrf.mxu0
  %v385 = vadd.f32 %v312, %v384
  %386 = vmatmul.bf16.gmra.mxu0 %v253
  %v387 = vpop.f32.mrf.mxu0
  %v388 = vadd.f32 %v315, %v387
  %v389 = vpop.f32.mrf.mxu0
  %v390 = vadd.f32 %v317, %v389
  %391 = vmatmul.bf16.gmra.mxu0 %v256
  %v392 = vpop.f32.mrf.mxu0
  %v393 = vadd.f32 %v320, %v392
  %v394 = vpop.f32.mrf.mxu0
  %v395 = vadd.f32 %v322, %v394
  %396 = vmatmul.bf16.gmra.mxu0 %v259
  %v397 = vpop.f32.mrf.mxu0
  %v398 = vadd.f32 %v325, %v397
  %v399 = vpop.f32.mrf.mxu0
  %v400 = vadd.f32 %v327, %v399
  %401 = vmatmul.bf16.gmra.mxu0 %v262
  %v402 = vpop.f32.mrf.mxu0
  %v403 = vadd.f32 %v330, %v402
  %v404 = vpop.f32.mrf.mxu0
  %v405 = vadd.f32 %v332, %v404
  %406 = vmatmul.bf16.gmra.mxu0 %v265
  %v407 = vpop.f32.mrf.mxu0
  %v408 = vadd.f32 %v335, %v407
  %v409 = vpop.f32.mrf.mxu0
  %v410 = vadd.f32 %v337, %v409
  %411 = vmatmul.bf16.gmra.mxu0 %v268
  %v412 = vpop.f32.mrf.mxu0
  %v413 = vadd.f32 %v340, %v412
  %v414 = vpop.f32.mrf.mxu0
  %415 = vdwg.mxu0
  %v416 = vmax.f32 %v353, 0.0
  %v417 = vmax.f32 %v355, 0.0
  %v418 = vmax.f32 %v358, 0.0
  %v419 = vmax.f32 %v360, 0.0
  %v420 = vmax.f32 %v363, 0.0
  %v421 = vmax.f32 %v365, 0.0
  %v422 = vmax.f32 %v368, 0.0
  %v423 = vmax.f32 %v370, 0.0
  %v424 = vmax.f32 %v373, 0.0
  %v425 = vmax.f32 %v375, 0.0
  %v426 = vmax.f32 %v378, 0.0
  %v427 = vmax.f32 %v380, 0.0
  %v428 = vmax.f32 %v383, 0.0
  %v429 = vmax.f32 %v385, 0.0
  %v430 = vmax.f32 %v388, 0.0
  %v431 = vmax.f32 %v390, 0.0
  %v432 = vmax.f32 %v393, 0.0
  %v433 = vmax.f32 %v395, 0.0
  %v434 = vmax.f32 %v398, 0.0
  %v435 = vmax.f32 %v400, 0.0
  %v436 = vmax.f32 %v403, 0.0
  %v437 = vmax.f32 %v405, 0.0
  %v438 = vmax.f32 %v408, 0.0
  %v439 = vmax.f32 %v410, 0.0
  %v440 = vmax.f32 %v413, 0.0
  %441 = vst [vmem:[%s3] sm:$0xff] %v416
  %442 = vst [vmem:[%s3 + $0x8] sm:$0xff] %v417
  %443 = vst [vmem:[%s3 + $0x10] sm:$0xff] %v418
  %444 = vst [vmem:[%s3 + $0x18] sm:$0xff] %v419
  %445 = vst [vmem:[%s3 + $0x20] sm:$0xff] %v420
  %446 = vst [vmem:[%s3 + $0x28] sm:$0xff] %v421
  %447 = vst [vmem:[%s3 + $0x30] sm:$0xff] %v422
  %448 = vst [vmem:[%s3 + $0x38] sm:$0xff] %v423
  %449 = vst [vmem:[%s3 + $0x40] sm:$0xff] %v424
  %450 = vst [vmem:[%s3 + $0x48] sm:$0xff] %v425
  %451 = vst [vmem:[%s3 + $0x50] sm:$0xff] %v426
  %452 = vst [vmem:[%s3 + $0x58] sm:$0xff] %v427
  %453 = vst [vmem:[%s3 + $0x60] sm:$0xff] %v428
  %454 = vst [vmem:[%s3 + $0x68] sm:$0xff] %v429
  %455 = vst [vmem:[%s3 + $0x70] sm:$0xff] %v430
  %456 = vst [vmem:[%s3 + $0x78] sm:$0xff] %v431
  %457 = vst [vmem:[%s3 + $0x80] sm:$0xff] %v432
  %458 = vst [vmem:[%s3 + $0x88] sm:$0xff] %v433
  %459 = vst [vmem:[%s3 + $0x90] sm:$0xff] %v434
  %460 = vst [vmem:[%s3 + $0x98] sm:$0xff] %v435
  %461 = vst [vmem:[%s3 + $0xa0] sm:$0xff] %v436
  %462 = vst [vmem:[%s3 + $0xa8] sm:$0xff] %v437
  %463 = vst [vmem:[%s3 + $0xb0] sm:$0xff] %v438
  %464 = vst [vmem:[%s3 + $0xb8] sm:$0xff] %v439
  %465 = vst [vmem:[%s3 + $0xc0] sm:$0xf] %v440
  // Predicated region
  $region14: #{model_forward.4} parent=0 // pred_check
    _
  $region15: #{model_forward.4} parent=0 // pred_check_branch
    %467 = sbr.rel (0) target = $region17
  $region16: #{model_forward.4} parent=0 // pred_region
    _
  $region17: #{model_forward.4} parent=0 // pred_fallthru
    _
  // Predicated region
  $region18: #{model_forward.4} parent=0 // pred_check
    _
  $region19: #{model_forward.4} parent=0 // pred_check_branch
    %469 = sbr.rel (0) target = $region21
  $region20: #{model_forward.4} parent=0 // pred_region
    _
  $region21: #{model_forward.4} parent=0 // pred_fallthru
    _

// kernel: model_forward.5
$region0: #{model_forward.5}
  #allocation0 [shape = 'u32[]', space=smem, size = 0x4, offset = 0x4, fixed_abs, tag = 'smem constant byte address 0x4 - core index']
  #allocation1 [shape = 'u32[72,128]{1,0:T(1,128)}', space=vmem, size = 0x9000, scoped, tag = 'internal scratch']
  %s0 = inlined_call_operand.vmem [shape: bf16[4,784], index: 0, kind: input, shape index: {}]
  %s1 = inlined_call_operand.vmem [shape: bf16[784,128], index: 1, kind: input, shape index: {}]
  %s2 = inlined_call_operand.vmem [shape: f32[1,128], index: 2, kind: input, shape index: {}]
  %s3 = inlined_call_operand.hbm [shape: f32[4,128], index: 3, kind: output, shape index: {}]
  %s4 = sld [smem:[#allocation0]]
  $region22: #{model_forward.5} parent=0
    _
  %s6 = ssub.s32 1, %s4
  %s7 = scalar_select 0, %s6, %s4
  $region1: #{model_forward.5} parent=0
    #allocation2 [shape = 'u8[2048]{0}', space=vmem, size = 0x800, scoped, tag = 'output window, operand 0, single buffered']
    #allocation3 [shape = 's32[1]{0}', space=sflag, size = 0x4, scoped, tag = 'scoped memory for model_forward.5']
    %8 = vsyncpa [#allocation3], 0
    // Predicated region
    $region2: #{model_forward.5} parent=1 // pred_check
      _
    $region3: #{model_forward.5} parent=1 // pred_check_branch
      %10 = sbr.rel (0) target = $region5
    $region4: #{model_forward.5} parent=1 // pred_region
      _
    $region5: #{model_forward.5} parent=1 // pred_fallthru
      _
    // Predicated region
    $region6: #{model_forward.5} parent=1 // pred_check
      _
    $region7: #{model_forward.5} parent=1 // pred_check_branch
      %12 = sbr.rel (0) target = $region9
    $region8: #{model_forward.5} parent=1 // pred_region
      _
    $region9: #{model_forward.5} parent=1 // pred_fallthru
      _
    // Predicated region
    $region10: #{model_forward.5} parent=1 // pred_check
      _
    $region11: #{model_forward.5} parent=1 // pred_check_branch
      %14 = sbr.rel (0) target = $region13
    $region12: #{model_forward.5} parent=1 // pred_region
      _
    $region13: #{model_forward.5} parent=1 // pred_fallthru
      _
    %v16 = vld [vmem:[%s0] sm:$0xff]
    %v17 = vld [vmem:[%s0 + $0x8] sm:$0x3f]
    %v18 = vld [vmem:[%s1] sm:$0xf]
    %v19 = vld [vmem:[%s1 + $0x4] sm:$0xf]
    %v20 = vld [vmem:[%s1 + $0x8] sm:$0xf]
    %v21 = vld [vmem:[%s1 + $0xc] sm:$0xf]
    %v22 = vld [vmem:[%s1 + $0x10] sm:$0xf]
    %v23 = vld [vmem:[%s1 + $0x14] sm:$0xf]
    %v24 = vld [vmem:[%s1 + $0x18] sm:$0xf]
    %v25 = vld [vmem:[%s1 + $0x1c] sm:$0xf]
    %v26 = vld [vmem:[%s1 + $0x20] sm:$0xf]
    %v27 = vld [vmem:[%s1 + $0x24] sm:$0xf]
    %v28 = vld [vmem:[%s1 + $0x28] sm:$0xf]
    %v29 = vld [vmem:[%s1 + $0x2c] sm:$0xf]
    %v30 = vld [vmem:[%s1 + $0x30] sm:$0xf]
    %v31 = vld [vmem:[%s1 + $0x34] sm:$0xf]
    %v32 = vld [vmem:[%s1 + $0x38] sm:$0xf]
    %v33 = vld [vmem:[%s1 + $0x3c] sm:$0xf]
    %v34 = vld [vmem:[%s1 + $0x40] sm:$0xf]
    %v35 = vld [vmem:[%s1 + $0x44] sm:$0xf]
    %v36 = vld [vmem:[%s1 + $0x48] sm:$0xf]
    %v37 = vld [vmem:[%s1 + $0x4c] sm:$0xf]
    %v38 = vld [vmem:[%s1 + $0x50] sm:$0xf]
    %v39 = vld [vmem:[%s1 + $0x54] sm:$0xf]
    %v40 = vld [vmem:[%s1 + $0x58] sm:$0xf]
    %v41 = vld [vmem:[%s1 + $0x5c] sm:$0xf]
    %v42 = vld [vmem:[%s1 + $0x60] sm:$0xf]
    %v43 = vld [vmem:[%s1 + $0x64] sm:$0xf]
    %v44 = vld [vmem:[%s1 + $0x68] sm:$0xf]
    %v45 = vld [vmem:[%s1 + $0x6c] sm:$0xf]
    %v46 = vld [vmem:[%s1 + $0x70] sm:$0xf]
    %v47 = vld [vmem:[%s1 + $0x74] sm:$0xf]
    %v48 = vld [vmem:[%s1 + $0x78] sm:$0xf]
    %v49 = vld [vmem:[%s1 + $0x7c] sm:$0xf]
    %v50 = vld [vmem:[%s1 + $0x80] sm:$0xf]
    %v51 = vld [vmem:[%s1 + $0x84] sm:$0xf]
    %v52 = vld [vmem:[%s1 + $0x88] sm:$0xf]
    %v53 = vld [vmem:[%s1 + $0x8c] sm:$0xf]
    %v54 = vld [vmem:[%s1 + $0x90] sm:$0xf]
    %v55 = vld [vmem:[%s1 + $0x94] sm:$0xf]
    %v56 = vld [vmem:[%s1 + $0x98] sm:$0xf]
    %v57 = vld [vmem:[%s1 + $0x9c] sm:$0xf]
    %v58 = vld [vmem:[%s1 + $0xa0] sm:$0xf]
    %v59 = vld [vmem:[%s1 + $0xa4] sm:$0xf]
    %v60 = vld [vmem:[%s1 + $0xa8] sm:$0xf]
    %v61 = vld [vmem:[%s1 + $0xac] sm:$0xf]
    %v62 = vld [vmem:[%s1 + $0xb0] sm:$0xf]
    %v63 = vld [vmem:[%s1 + $0xb4] sm:$0xf]
    %v64 = vld [vmem:[%s1 + $0xb8] sm:$0xf]
    %v65 = vld [vmem:[%s1 + $0xbc] sm:$0xf]
    %v66 = vld [vmem:[%s1 + $0xc0] sm:$0xf]
    %v67 = vld [vmem:[%s1 + $0xc4] sm:$0xf]
    %v68 = vld [vmem:[%s1 + $0xc8] sm:$0xf]
    %v69 = vld [vmem:[%s1 + $0xcc] sm:$0xf]
    %v70 = vld [vmem:[%s1 + $0xd0] sm:$0xf]
    %v71 = vld [vmem:[%s1 + $0xd4] sm:$0xf]
    %v72 = vld [vmem:[%s1 + $0xd8] sm:$0xf]
    %v73 = vld [vmem:[%s1 + $0xdc] sm:$0xf]
    %v74 = vld [vmem:[%s1 + $0xe0] sm:$0xf]
    %v75 = vld [vmem:[%s1 + $0xe4] sm:$0xf]
    %v76 = vld [vmem:[%s1 + $0xe8] sm:$0xf]
    %v77 = vld [vmem:[%s1 + $0xec] sm:$0xf]
    %v78 = vld [vmem:[%s1 + $0xf0] sm:$0xf]
    %v79 = vld [vmem:[%s1 + $0xf4] sm:$0xf]
    %v80 = vld [vmem:[%s1 + $0xf8] sm:$0xf]
    %v81 = vld [vmem:[%s1 + $0xfc] sm:$0xf]
    %v82 = vld [vmem:[%s1 + $0x100] sm:$0xf]
    %v83 = vld [vmem:[%s1 + $0x104] sm:$0xf]
    %v84 = vld [vmem:[%s1 + $0x108] sm:$0xf]
    %v85 = vld [vmem:[%s1 + $0x10c] sm:$0xf]
    %v86 = vld [vmem:[%s1 + $0x110] sm:$0xf]
    %v87 = vld [vmem:[%s1 + $0x114] sm:$0xf]
    %v88 = vld [vmem:[%s1 + $0x118] sm:$0xf]
    %v89 = vld [vmem:[%s1 + $0x11c] sm:$0xf]
    %v90 = vld [vmem:[%s1 + $0x120] sm:$0xf]
    %v91 = vld [vmem:[%s1 + $0x124] sm:$0xf]
    %v92 = vld [vmem:[%s1 + $0x128] sm:$0xf]
    %v93 = vld [vmem:[%s1 + $0x12c] sm:$0xf]
    %v94 = vld [vmem:[%s1 + $0x130] sm:$0xf]
    %v95 = vld [vmem:[%s1 + $0x134] sm:$0xf]
    %v96 = vld [vmem:[%s1 + $0x138] sm:$0xf]
    %v97 = vld [vmem:[%s1 + $0x13c] sm:$0xf]
    %v98 = vld [vmem:[%s1 + $0x140] sm:$0xf]
    %v99 = vld [vmem:[%s1 + $0x144] sm:$0xf]
    %v100 = vld [vmem:[%s1 + $0x148] sm:$0xf]
    %v101 = vld [vmem:[%s1 + $0x14c] sm:$0xf]
    %v102 = vld [vmem:[%s1 + $0x150] sm:$0xf]
    %v103 = vld [vmem:[%s1 + $0x154] sm:$0xf]
    %v104 = vld [vmem:[%s1 + $0x158] sm:$0xf]
    %v105 = vld [vmem:[%s1 + $0x15c] sm:$0xf]
    %v106 = vld [vmem:[%s1 + $0x160] sm:$0xf]
    %v107 = vld [vmem:[%s1 + $0x164] sm:$0xf]
    %v108 = vld [vmem:[%s1 + $0x168] sm:$0xf]
    %v109 = vld [vmem:[%s1 + $0x16c] sm:$0xf]
    %v110 = vld [vmem:[%s1 + $0x170] sm:$0xf]
    %v111 = vld [vmem:[%s1 + $0x174] sm:$0xf]
    %v112 = vld [vmem:[%s1 + $0x178] sm:$0xf]
    %v113 = vld [vmem:[%s1 + $0x17c] sm:$0xf]
    %v114 = vld [vmem:[%s1 + $0x180] sm:$0xf]
    %v115 = vld [vmem:[%s1 + $0x184] sm:$0xf]
    %v116 = vld [vmem:[%s2] sm:$0x1]
    %v118 = vperm.slane %v116, 0
    %121 = vst [vmem:[#allocation1] ss:$4 sm:$0xff] %v16
    %s123 = scalar_lea.vmem [#allocation1], 32
    %124 = vst [vmem:[%s123] ss:$4 sm:$0xff] %v17
    %v125 = vld.sshfl [vmem:[#allocation1] sm:$0xff pattern:$0x73625140]
    %v126 = vld.sshfl [vmem:[#allocation1 + $0x8] sm:$0xff pattern:$0x73625140]
    %v127 = vld.sshfl [vmem:[#allocation1 + $0x10] sm:$0xff pattern:$0x73625140]
    %v128 = vld.sshfl [vmem:[#allocation1 + $0x18] sm:$0xff pattern:$0x73625140]
    %v129 = vld.sshfl [vmem:[#allocation1 + $0x20] sm:$0xff pattern:$0x73625140]
    %v130 = vld.sshfl [vmem:[#allocation1 + $0x28] sm:$0xff pattern:$0x73625140]
    %v131 = vld.sshfl [vmem:[#allocation1 + $0x30] sm:$0xff pattern:$0x73625140]
    %v236 = vunpack.c.l.b16 %v18
    %v237 = vunpack.c.l.b16 %v19
    %v238 = vunpack.c.l.b16 %v20
    %v239 = vunpack.c.l.b16 %v21
    %v240 = vunpack.c.l.b16 %v22
    %v241 = vunpack.c.l.b16 %v23
    %v242 = vunpack.c.l.b16 %v24
    %v243 = vunpack.c.l.b16 %v25
    %v244 = vunpack.c.l.b16 %v26
    %v245 = vunpack.c.l.b16 %v27
    %v246 = vunpack.c.l.b16 %v28
    %v247 = vunpack.c.l.b16 %v29
    %v248 = vunpack.c.l.b16 %v30
    %v249 = vunpack.c.l.b16 %v31
    %v250 = vunpack.c.l.b16 %v32
    %v251 = vunpack.c.l.b16 %v33
    %v252 = vunpack.c.l.b16 %v34
    %v253 = vunpack.c.l.b16 %v35
    %v254 = vunpack.c.l.b16 %v36
    %v255 = vunpack.c.l.b16 %v37
    %v256 = vunpack.c.l.b16 %v38
    %v257 = vunpack.c.l.b16 %v39
    %v258 = vunpack.c.l.b16 %v40
    %v259 = vunpack.c.l.b16 %v41
    %v260 = vunpack.c.l.b16 %v42
    %v261 = vunpack.c.l.b16 %v43
    %v262 = vunpack.c.l.b16 %v44
    %v263 = vunpack.c.l.b16 %v45
    %v264 = vunpack.c.l.b16 %v46
    %v265 = vunpack.c.l.b16 %v47
    %v266 = vunpack.c.l.b16 %v48
    %v267 = vunpack.c.l.b16 %v49
    %v268 = vunpack.c.l.b16 %v50
    %v269 = vunpack.c.l.b16 %v51
    %v270 = vunpack.c.l.b16 %v52
    %v271 = vunpack.c.l.b16 %v53
    %v272 = vunpack.c.l.b16 %v54
    %v273 = vunpack.c.l.b16 %v55
    %v274 = vunpack.c.l.b16 %v56
    %v275 = vunpack.c.l.b16 %v57
    %v276 = vunpack.c.l.b16 %v58
    %v277 = vunpack.c.l.b16 %v59
    %v278 = vunpack.c.l.b16 %v60
    %v279 = vunpack.c.l.b16 %v61
    %v280 = vunpack.c.l.b16 %v62
    %v281 = vunpack.c.l.b16 %v63
    %v282 = vunpack.c.l.b16 %v64
    %v283 = vunpack.c.l.b16 %v65
    %v284 = vunpack.c.l.b16 %v66
    %v285 = vunpack.c.l.b16 %v67
    %v286 = vunpack.c.l.b16 %v68
    %v287 = vunpack.c.l.b16 %v69
    %v288 = vunpack.c.l.b16 %v70
    %v289 = vunpack.c.l.b16 %v71
    %v290 = vunpack.c.l.b16 %v72
    %v291 = vunpack.c.l.b16 %v73
    %v292 = vunpack.c.l.b16 %v74
    %v293 = vunpack.c.l.b16 %v75
    %v294 = vunpack.c.l.b16 %v76
    %v295 = vunpack.c.l.b16 %v77
    %v296 = vunpack.c.l.b16 %v78
    %v297 = vunpack.c.l.b16 %v79
    %v298 = vunpack.c.l.b16 %v80
    %v299 = vunpack.c.l.b16 %v81
    %v300 = vunpack.c.l.b16 %v82
    %v301 = vunpack.c.l.b16 %v83
    %v302 = vunpack.c.l.b16 %v84
    %v303 = vunpack.c.l.b16 %v85
    %v304 = vunpack.c.l.b16 %v86
    %v305 = vunpack.c.l.b16 %v87
    %v306 = vunpack.c.l.b16 %v88
    %v307 = vunpack.c.l.b16 %v89
    %v308 = vunpack.c.l.b16 %v90
    %v309 = vunpack.c.l.b16 %v91
    %v310 = vunpack.c.l.b16 %v92
    %v311 = vunpack.c.l.b16 %v93
    %v312 = vunpack.c.l.b16 %v94
    %v313 = vunpack.c.l.b16 %v95
    %v314 = vunpack.c.l.b16 %v96
    %v315 = vunpack.c.l.b16 %v97
    %v316 = vunpack.c.l.b16 %v98
    %v317 = vunpack.c.l.b16 %v99
    %v318 = vunpack.c.l.b16 %v100
    %v319 = vunpack.c.l.b16 %v101
    %v320 = vunpack.c.l.b16 %v102
    %v321 = vunpack.c.l.b16 %v103
    %v322 = vunpack.c.l.b16 %v104
    %v323 = vunpack.c.l.b16 %v105
    %v324 = vunpack.c.l.b16 %v106
    %v325 = vunpack.c.l.b16 %v107
    %v326 = vunpack.c.l.b16 %v108
    %v327 = vunpack.c.l.b16 %v109
    %v328 = vunpack.c.l.b16 %v110
    %v329 = vunpack.c.l.b16 %v111
    %v330 = vunpack.c.l.b16 %v112
    %v331 = vunpack.c.l.b16 %v113
    %v332 = vunpack.c.l.b16 %v114
    %v333 = vunpack.c.l.b16 %v115
    %v334 = vpack.c.b16 %v237, %v236
    %v335 = vpack.c.b16 %v239, %v238
    %v336 = vpack.c.b16 %v241, %v240
    %v337 = vpack.c.b16 %v243, %v242
    %v338 = vpack.c.b16 %v245, %v244
    %v339 = vpack.c.b16 %v247, %v246
    %v340 = vpack.c.b16 %v249, %v248
    %v341 = vpack.c.b16 %v251, %v250
    %v342 = vpack.c.b16 %v253, %v252
    %v343 = vpack.c.b16 %v255, %v254
    %v344 = vpack.c.b16 %v257, %v256
    %v345 = vpack.c.b16 %v259, %v258
    %v346 = vpack.c.b16 %v261, %v260
    %v347 = vpack.c.b16 %v263, %v262
    %v348 = vpack.c.b16 %v265, %v264
    %v349 = vpack.c.b16 %v267, %v266
    %v350 = vpack.c.b16 %v269, %v268
    %v351 = vpack.c.b16 %v271, %v270
    %v352 = vpack.c.b16 %v273, %v272
    %v353 = vpack.c.b16 %v275, %v274
    %v354 = vpack.c.b16 %v277, %v276
    %v355 = vpack.c.b16 %v279, %v278
    %v356 = vpack.c.b16 %v281, %v280
    %v357 = vpack.c.b16 %v283, %v282
    %v358 = vpack.c.b16 %v285, %v284
    %v359 = vpack.c.b16 %v287, %v286
    %v360 = vpack.c.b16 %v289, %v288
    %v361 = vpack.c.b16 %v291, %v290
    %v362 = vpack.c.b16 %v293, %v292
    %v363 = vpack.c.b16 %v295, %v294
    %v364 = vpack.c.b16 %v297, %v296
    %v365 = vpack.c.b16 %v299, %v298
    %v366 = vpack.c.b16 %v301, %v300
    %v367 = vpack.c.b16 %v303, %v302
    %v368 = vpack.c.b16 %v305, %v304
    %v369 = vpack.c.b16 %v307, %v306
    %v370 = vpack.c.b16 %v309, %v308
    %v371 = vpack.c.b16 %v311, %v310
    %v372 = vpack.c.b16 %v313, %v312
    %v373 = vpack.c.b16 %v315, %v314
    %v374 = vpack.c.b16 %v317, %v316
    %v375 = vpack.c.b16 %v319, %v318
    %v376 = vpack.c.b16 %v321, %v320
    %v377 = vpack.c.b16 %v323, %v322
    %v378 = vpack.c.b16 %v325, %v324
    %v379 = vpack.c.b16 %v327, %v326
    %v380 = vpack.c.b16 %v329, %v328
    %v381 = vpack.c.b16 %v331, %v330
    %v382 = vpack.c.b16 %v333, %v332
    %vm432 = vcmask 130048
    %v433 = vsel %vm432, %v131, 0
    %435 = vmatpush.bf16.msra.mxu0 %v341
    %436 = vmatpush.bf16.msra.mxu0 %v340
    %437 = vmatpush.bf16.msra.mxu0 %v339
    %438 = vmatpush.bf16.msra.mxu0 %v338
    %439 = vmatpush.bf16.msra.mxu0 %v337
    %440 = vmatpush.bf16.msra.mxu0 %v336
    %441 = vmatpush.bf16.msra.mxu0 %v335
    %442 = vmatpush.bf16.msra.mxu0 %v334
    %443 = vmatmul.bf16.gmra.mxu0 %v125
    %v444 = vpop.f32.mrf.mxu0
    %v445 = vadd.f32 %v118, %v444
    %v446 = vpop.f32.mrf.mxu0
    %447 = vdwg.mxu0
    %448 = vmatpush.bf16.msra.mxu0 %v349
    %449 = vmatpush.bf16.msra.mxu0 %v348
    %450 = vmatpush.bf16.msra.mxu0 %v347
    %451 = vmatpush.bf16.msra.mxu0 %v346
    %452 = vmatpush.bf16.msra.mxu0 %v345
    %453 = vmatpush.bf16.msra.mxu0 %v344
    %454 = vmatpush.bf16.msra.mxu0 %v343
    %455 = vmatpush.bf16.msra.mxu0 %v342
    %456 = vmatmul.bf16.gmra.mxu0 %v126
    %v457 = vpop.f32.mrf.mxu0
    %v458 = vadd.f32 %v445, %v457
    %v459 = vpop.f32.mrf.mxu0
    %460 = vdwg.mxu0
    %461 = vmatpush.bf16.msra.mxu0 %v357
    %462 = vmatpush.bf16.msra.mxu0 %v356
    %463 = vmatpush.bf16.msra.mxu0 %v355
    %464 = vmatpush.bf16.msra.mxu0 %v354
    %465 = vmatpush.bf16.msra.mxu0 %v353
    %466 = vmatpush.bf16.msra.mxu0 %v352
    %467 = vmatpush.bf16.msra.mxu0 %v351
    %468 = vmatpush.bf16.msra.mxu0 %v350
    %469 = vmatmul.bf16.gmra.mxu0 %v127
    %v470 = vpop.f32.mrf.mxu0
    %v471 = vadd.f32 %v458, %v470
    %v472 = vpop.f32.mrf.mxu0
    %473 = vdwg.mxu0
    %474 = vmatpush.bf16.msra.mxu0 %v365
    %475 = vmatpush.bf16.msra.mxu0 %v364
    %476 = vmatpush.bf16.msra.mxu0 %v363
    %477 = vmatpush.bf16.msra.mxu0 %v362
    %478 = vmatpush.bf16.msra.mxu0 %v361
    %479 = vmatpush.bf16.msra.mxu0 %v360
    %480 = vmatpush.bf16.msra.mxu0 %v359
    %481 = vmatpush.bf16.msra.mxu0 %v358
    %482 = vmatmul.bf16.gmra.mxu0 %v128
    %v483 = vpop.f32.mrf.mxu0
    %v484 = vadd.f32 %v471, %v483
    %v485 = vpop.f32.mrf.mxu0
    %486 = vdwg.mxu0
    %487 = vmatpush.bf16.msra.mxu0 %v373
    %488 = vmatpush.bf16.msra.mxu0 %v372
    %489 = vmatpush.bf16.msra.mxu0 %v371
    %490 = vmatpush.bf16.msra.mxu0 %v370
    %491 = vmatpush.bf16.msra.mxu0 %v369
    %492 = vmatpush.bf16.msra.mxu0 %v368
    %493 = vmatpush.bf16.msra.mxu0 %v367
    %494 = vmatpush.bf16.msra.mxu0 %v366
    %495 = vmatmul.bf16.gmra.mxu0 %v129
    %v496 = vpop.f32.mrf.mxu0
    %v497 = vadd.f32 %v484, %v496
    %v498 = vpop.f32.mrf.mxu0
    %499 = vdwg.mxu0
    %500 = vmatpush.bf16.msra.mxu0 %v381
    %501 = vmatpush.bf16.msra.mxu0 %v380
    %502 = vmatpush.bf16.msra.mxu0 %v379
    %503 = vmatpush.bf16.msra.mxu0 %v378
    %504 = vmatpush.bf16.msra.mxu0 %v377
    %505 = vmatpush.bf16.msra.mxu0 %v376
    %506 = vmatpush.bf16.msra.mxu0 %v375
    %507 = vmatpush.bf16.msra.mxu0 %v374
    %508 = vmatmul.bf16.gmra.mxu0 %v130
    %v509 = vpop.f32.mrf.mxu0
    %v510 = vadd.f32 %v497, %v509
    %v511 = vpop.f32.mrf.mxu0
    %512 = vdwg.mxu0
    %513 = vmatpush.bf16.msra.mxu0 0
    %514 = vmatpush.bf16.msra.mxu0 0
    %515 = vmatpush.bf16.msra.mxu0 0
    %516 = vmatpush.bf16.msra.mxu0 0
    %517 = vmatpush.bf16.msra.mxu0 0
    %518 = vmatpush.bf16.msra.mxu0 0
    %519 = vmatpush.bf16.msra.mxu0 0
    %520 = vmatpush.bf16.msra.mxu0 %v382
    %521 = vmatmul.bf16.gmra.mxu0 %v433
    %v522 = vpop.f32.mrf.mxu0
    %v523 = vadd.f32 %v510, %v522
    %v524 = vpop.f32.mrf.mxu0
    %525 = vdwg.mxu0
    %526 = vst [vmem:[#allocation2] sm:$0xf] %v523
    // Predicated region
    $region14: #{model_forward.5} parent=1 // pred_check
      _
    $region15: #{model_forward.5} parent=1 // pred_check_branch
      %528 = sbr.rel (0) target = $region17
    $region16: #{model_forward.5} parent=1 // pred_region
      %530 = vsyncadd [#allocation3], 0
      %s532 = sshll.u32 [#allocation2], 4
      %s533 = int_to_ptr.vmem [resolvable:$true] %s532
      %s534 = sshll.u32 %s3, 4
      %s535 = int_to_ptr.hbm [resolvable:$true] %s534
      %537 = dma.vmem_to_hbm [thread:$0]  %s533, 64, %s535, [#allocation3]
    $region17: #{model_forward.5} parent=1 // pred_fallthru
      _
    // Predicated region
    $region18: #{model_forward.5} parent=1 // pred_check
      _
    $region19: #{model_forward.5} parent=1 // pred_check_branch
      %539 = sbr.rel (0) target = $region21
    $region20: #{model_forward.5} parent=1 // pred_region
      %541 = dma.done [#allocation3], 64
    $region21: #{model_forward.5} parent=1 // pred_fallthru
      _
    %542 = vsyncpa [#allocation3], 1

</llo_original>
